<compile_context>
chip_gen: v5e
topology: v5e:2x2
jax: 0.10.0
libtpu: 0.0.40
codegen_flags: <defaults>
</compile_context>

<pallas_src>
import jax
import jax.numpy as jnp
from jax.experimental import pallas as pl
from jax.experimental.pallas import tpu as pltpu

D_IN = 28 * 28          # 784
D_IN_PAD = 896          # 7 * 128 -> lane-dense x tiles
HID = 64
N_OUT = 10
N_OUT_PAD = 128         # lane-dense output stores
NEG_BIG = -1e30         # "minus infinity" for padded logit columns


def _round_up(x, m):
    return ((x + m - 1) // m) * m


def mlp_kernel(x_ref, w1_ref, w2_ref, w3_ref, w4_ref, b_ref, o_ref):
    # biases live in one (4, 128) grid-invariant block: rows 0..2 hold b1..b3 in the
    # first 64 lanes, row 3 holds b4 padded with NEG_BIG so padded logits vanish in
    # the softmax.
    b1 = b_ref[0:1, 0:HID]
    b2 = b_ref[1:2, 0:HID]
    b3 = b_ref[2:3, 0:HID]
    b4 = b_ref[3:4, :]

    # fc1 + relu  (x / w1 may be bf16; accumulate in f32 on the MXU)
    h = jnp.dot(x_ref[...], w1_ref[...], preferred_element_type=jnp.float32)
    h = jnp.maximum(h + b1, 0.0)
    # fc2 + relu
    h = jnp.dot(h, w2_ref[...], preferred_element_type=jnp.float32)
    h = jnp.maximum(h + b2, 0.0)
    # fc3 + relu
    h = jnp.dot(h, w3_ref[...], preferred_element_type=jnp.float32)
    h = jnp.maximum(h + b3, 0.0)
    # fc4 (logits, padded to 128 lanes; padded columns get bias NEG_BIG)
    z = jnp.dot(h, w4_ref[...], preferred_element_type=jnp.float32) + b4

    # log_softmax along dim=1 (padded columns contribute exp(~-1e30) == 0)
    m = jnp.max(z, axis=-1, keepdims=True)
    zm = z - m
    lse = jnp.log(jnp.sum(jnp.exp(zm), axis=-1, keepdims=True))
    o_ref[...] = (zm - lse).astype(o_ref.dtype)


def mlp_forward(x, params, *, tile_b=1024, use_bf16_inputs=True):
    """x: (B, 784) float32; params: dict of transposed weights / biases.

    Returns (B, 10) float32 log-probabilities.
    """
    B, D = x.shape
    assert D == D_IN

    # Effective batch tile: big enough to fill the MXU / amortize grid overhead, but
    # never bigger than the (padded) batch.  Multiple of 256 keeps (sublane, lane)
    # tiling happy for both f32 and bf16.
    tb = _round_up(min(tile_b, _round_up(max(B, 1), 256)), 256)
    Bp = _round_up(B, tb)

    in_dtype = jnp.bfloat16 if use_bf16_inputs else jnp.float32

    # Pad x to (Bp, 896) and cast the heavy operand to bf16 (zeros in padding keep the
    # math exact).
    xp = jnp.zeros((Bp, D_IN_PAD), in_dtype).at[:B, :D_IN].set(x.astype(in_dtype))
    w1 = jnp.zeros((D_IN_PAD, HID), in_dtype).at[:D_IN, :].set(
        params["w1"].astype(in_dtype))
    w2 = params["w2"].astype(jnp.float32)
    w3 = params["w3"].astype(jnp.float32)
    # Pad w4 / b4 to 128 output lanes; padded logit columns get bias NEG_BIG so they
    # contribute nothing to the softmax.
    w4 = jnp.zeros((HID, N_OUT_PAD), jnp.float32).at[:, :N_OUT].set(
        params["w4"].astype(jnp.float32))
    biases = jnp.zeros((4, N_OUT_PAD), jnp.float32)
    biases = biases.at[0, :HID].set(params["b1"].reshape(-1).astype(jnp.float32))
    biases = biases.at[1, :HID].set(params["b2"].reshape(-1).astype(jnp.float32))
    biases = biases.at[2, :HID].set(params["b3"].reshape(-1).astype(jnp.float32))
    b4_row = jnp.full((N_OUT_PAD,), NEG_BIG, jnp.float32).at[:N_OUT].set(
        params["b4"].reshape(-1).astype(jnp.float32))
    biases = biases.at[3, :].set(b4_row)

    invariant = lambda i: (0, 0)   # weights / biases: same whole block every batch tile

    out_padded = pl.pallas_call(
        mlp_kernel,
        out_shape=jax.ShapeDtypeStruct((Bp, N_OUT_PAD), jnp.float32),
        grid_spec=pltpu.PrefetchScalarGridSpec(
            num_scalar_prefetch=0,
            grid=(Bp // tb,),
            in_specs=[
                pl.BlockSpec((tb, D_IN_PAD), lambda i: (i, 0)),      # x tile
                pl.BlockSpec((D_IN_PAD, HID), invariant),            # w1 (896, 64)
                pl.BlockSpec((HID, HID), invariant),                 # w2 (64, 64)
                pl.BlockSpec((HID, HID), invariant),                 # w3 (64, 64)
                pl.BlockSpec((HID, N_OUT_PAD), invariant),           # w4 (64, 128)
                pl.BlockSpec((4, N_OUT_PAD), invariant),             # all biases
            ],
            out_specs=pl.BlockSpec((tb, N_OUT_PAD), lambda i: (i, 0)),
        ),
        compiler_params=pltpu.CompilerParams(
            dimension_semantics=("parallel",),       # megacore / v7x dual-TC sharding
            vmem_limit_bytes=32 * 1024 * 1024,       # safe on v5e/v6e/v7x; ~6 MiB used
        ),
    )(xp, w1, w2, w3, w4, biases)

    return out_padded[:B, :N_OUT]


def init_params(key):
    """Deterministic init matching nn.Linear default: U(-1/sqrt(fan_in), 1/sqrt(fan_in)).
    Weights stored as (in_features, out_features); biases as (1, out_features)."""
    dims = [(D_IN, HID), (HID, HID), (HID, HID), (HID, N_OUT)]
    params = {}
    for idx, (fan_in, fan_out) in enumerate(dims, start=1):
        key, kw, kb = jax.random.split(key, 3)
        bound = 1.0 / (fan_in ** 0.5)
        params[f"w{idx}"] = jax.random.uniform(
            kw, (fan_in, fan_out), jnp.float32, minval=-bound, maxval=bound)
        params[f"b{idx}"] = jax.random.uniform(
            kb, (1, fan_out), jnp.float32, minval=-bound, maxval=bound)
    return params


def reference_forward(x, p):
    h = jnp.maximum(x @ p["w1"] + p["b1"], 0.0)
    h = jnp.maximum(h @ p["w2"] + p["b2"], 0.0)
    h = jnp.maximum(h @ p["w3"] + p["b3"], 0.0)
    z = h @ p["w4"] + p["b4"]
    return jax.nn.log_softmax(z, axis=1)


if __name__ == "__main__":
    key = jax.random.PRNGKey(0)
    kx, kp = jax.random.split(key)

    B = 16  # small example batch; wrapper pads to the batch tile internally
    x = jax.random.normal(kx, (B, D_IN), dtype=jnp.float32)
    params = init_params(kp)
    ref = reference_forward(x, params)

    # Pure-f32 path: must match the reference tightly.
    out_f32 = jax.block_until_ready(mlp_forward(x, params, use_bf16_inputs=False))
    assert out_f32.shape == (B, N_OUT)
    assert jnp.allclose(out_f32, ref, atol=1e-5, rtol=1e-5), "f32 mismatch vs reference"

    # Default fast path (bf16 x / w1, f32 accumulation): small numerical slack.
    out_fast = jax.block_until_ready(mlp_forward(x, params))
    assert out_fast.shape == (B, N_OUT)
    assert jnp.allclose(out_fast, ref, atol=3e-2, rtol=3e-2), "bf16 mismatch vs reference"

    print("KERNEL_OK")
</pallas_src>

<mosaic_0001>
module attributes {stable_mosaic.version = 11 : i64} {
  func.func @mlp_kernel(%arg0: i32, %arg1: memref<256x896xf32, #tpu.memory_space<vmem>>, %arg2: memref<896x64xf32, #tpu.memory_space<vmem>>, %arg3: memref<64x64xf32, #tpu.memory_space<vmem>>, %arg4: memref<64x64xf32, #tpu.memory_space<vmem>>, %arg5: memref<64x128xf32, #tpu.memory_space<vmem>>, %arg6: memref<4x128xf32, #tpu.memory_space<vmem>>, %arg7: memref<256x128xf32, #tpu.memory_space<vmem>>) attributes {dimension_semantics = [#tpu.dimension_semantics<parallel>], iteration_bounds = array<i64: 1>, scalar_prefetch = 0 : i64, scratch_operands = 0 : i64, tpu.core_type = #tpu.core_type<tc>, window_params = [{transform_indices = @transform_0, window_bounds = array<i64: 256, 896>}, {pipeline_mode = #tpu.pipeline_mode<synchronous>, transform_indices = @transform_1, window_bounds = array<i64: 896, 64>}, {pipeline_mode = #tpu.pipeline_mode<synchronous>, transform_indices = @transform_2, window_bounds = array<i64: 64, 64>}, {pipeline_mode = #tpu.pipeline_mode<synchronous>, transform_indices = @transform_3, window_bounds = array<i64: 64, 64>}, {pipeline_mode = #tpu.pipeline_mode<synchronous>, transform_indices = @transform_4, window_bounds = array<i64: 64, 128>}, {pipeline_mode = #tpu.pipeline_mode<synchronous>, transform_indices = @transform_5, window_bounds = array<i64: 4, 128>}, {transform_indices = @transform_6, window_bounds = array<i64: 256, 128>}]} {
    %c0 = arith.constant 0 : index
    %c0_0 = arith.constant 0 : index
    %0 = vector.load %arg6[%c0, %c0_0] : memref<4x128xf32, #tpu.memory_space<vmem>>, vector<1x64xf32>
    %c1 = arith.constant 1 : index
    %c0_1 = arith.constant 0 : index
    %1 = vector.load %arg6[%c1, %c0_1] : memref<4x128xf32, #tpu.memory_space<vmem>>, vector<1x64xf32>
    %c2 = arith.constant 2 : index
    %c0_2 = arith.constant 0 : index
    %2 = vector.load %arg6[%c2, %c0_2] : memref<4x128xf32, #tpu.memory_space<vmem>>, vector<1x64xf32>
    %c3 = arith.constant 3 : index
    %c0_3 = arith.constant 0 : index
    %3 = vector.load %arg6[%c3, %c0_3] : memref<4x128xf32, #tpu.memory_space<vmem>>, vector<1x128xf32>
    %c0_4 = arith.constant 0 : index
    %c0_5 = arith.constant 0 : index
    %4 = vector.load %arg1[%c0_4, %c0_5] : memref<256x896xf32, #tpu.memory_space<vmem>>, vector<256x896xf32>
    %c0_6 = arith.constant 0 : index
    %c0_7 = arith.constant 0 : index
    %5 = vector.load %arg2[%c0_6, %c0_7] : memref<896x64xf32, #tpu.memory_space<vmem>>, vector<896x64xf32>
    %cst = arith.constant dense<0.000000e+00> : vector<256x64xf32>
    %6 = tpu.matmul %4, %5, %cst {dimension_numbers = #tpu.dot_dimension_numbers<[1], [0], [0], [1], [0, 0, 1, 1], [], []>} : vector<256x896xf32>, vector<896x64xf32>, vector<256x64xf32> -> vector<256x64xf32>
    %7 = vector.broadcast %0 : vector<1x64xf32> to vector<256x64xf32>
    %8 = arith.addf %6, %7 : vector<256x64xf32>
    %cst_8 = arith.constant 0.000000e+00 : f32
    %9 = vector.broadcast %cst_8 : f32 to vector<256x64xf32>
    %10 = arith.maximumf %8, %9 : vector<256x64xf32>
    %c0_9 = arith.constant 0 : index
    %c0_10 = arith.constant 0 : index
    %11 = vector.load %arg3[%c0_9, %c0_10] : memref<64x64xf32, #tpu.memory_space<vmem>>, vector<64x64xf32>
    %cst_11 = arith.constant dense<0.000000e+00> : vector<256x64xf32>
    %12 = tpu.matmul %10, %11, %cst_11 {dimension_numbers = #tpu.dot_dimension_numbers<[1], [0], [0], [1], [0, 0, 1, 1], [], []>} : vector<256x64xf32>, vector<64x64xf32>, vector<256x64xf32> -> vector<256x64xf32>
    %13 = vector.broadcast %1 : vector<1x64xf32> to vector<256x64xf32>
    %14 = arith.addf %12, %13 : vector<256x64xf32>
    %cst_12 = arith.constant 0.000000e+00 : f32
    %15 = vector.broadcast %cst_12 : f32 to vector<256x64xf32>
    %16 = arith.maximumf %14, %15 : vector<256x64xf32>
    %c0_13 = arith.constant 0 : index
    %c0_14 = arith.constant 0 : index
    %17 = vector.load %arg4[%c0_13, %c0_14] : memref<64x64xf32, #tpu.memory_space<vmem>>, vector<64x64xf32>
    %cst_15 = arith.constant dense<0.000000e+00> : vector<256x64xf32>
    %18 = tpu.matmul %16, %17, %cst_15 {dimension_numbers = #tpu.dot_dimension_numbers<[1], [0], [0], [1], [0, 0, 1, 1], [], []>} : vector<256x64xf32>, vector<64x64xf32>, vector<256x64xf32> -> vector<256x64xf32>
    %19 = vector.broadcast %2 : vector<1x64xf32> to vector<256x64xf32>
    %20 = arith.addf %18, %19 : vector<256x64xf32>
    %cst_16 = arith.constant 0.000000e+00 : f32
    %21 = vector.broadcast %cst_16 : f32 to vector<256x64xf32>
    %22 = arith.maximumf %20, %21 : vector<256x64xf32>
    %c0_17 = arith.constant 0 : index
    %c0_18 = arith.constant 0 : index
    %23 = vector.load %arg5[%c0_17, %c0_18] : memref<64x128xf32, #tpu.memory_space<vmem>>, vector<64x128xf32>
    %cst_19 = arith.constant dense<0.000000e+00> : vector<256x128xf32>
    %24 = tpu.matmul %22, %23, %cst_19 {dimension_numbers = #tpu.dot_dimension_numbers<[1], [0], [0], [1], [0, 0, 1, 1], [], []>} : vector<256x64xf32>, vector<64x128xf32>, vector<256x128xf32> -> vector<256x128xf32>
    %25 = vector.broadcast %3 : vector<1x128xf32> to vector<256x128xf32>
    %26 = arith.addf %24, %25 : vector<256x128xf32>
    %cst_20 = arith.constant dense<0xFF800000> : vector<256xf32>
    %27 = vector.multi_reduction <maximumf>, %26, %cst_20 [1] : vector<256x128xf32> to vector<256xf32>
    %28 = vector.shape_cast %27 : vector<256xf32> to vector<256x1xf32>
    %29 = vector.broadcast %28 : vector<256x1xf32> to vector<256x128xf32>
    %30 = arith.subf %26, %29 : vector<256x128xf32>
    %31 = math.exp %30 : vector<256x128xf32>
    %cst_21 = arith.constant dense<0.000000e+00> : vector<256xf32>
    %32 = vector.multi_reduction <add>, %31, %cst_21 [1] : vector<256x128xf32> to vector<256xf32>
    %33 = vector.shape_cast %32 : vector<256xf32> to vector<256x1xf32>
    %34 = math.log %33 : vector<256x1xf32>
    %35 = vector.broadcast %34 : vector<256x1xf32> to vector<256x128xf32>
    %36 = arith.subf %30, %35 : vector<256x128xf32>
    %c0_22 = arith.constant 0 : index
    %c0_23 = arith.constant 0 : index
    %37 = vector.load %arg7[%c0_22, %c0_23] : memref<256x128xf32, #tpu.memory_space<vmem>>, vector<256x128xf32>
    tpu.vector_store %arg7[%c0_22, %c0_23], %36 {strides = array<i32>} : memref<256x128xf32, #tpu.memory_space<vmem>>, vector<256x128xf32>,
    return
  }
  func.func @transform_0(%arg0: i32) -> (i32, i32) {
    %c0_i32 = arith.constant 0 : i32
    %c0_i32_0 = arith.constant 0 : i32
    return %arg0, %c0_i32 : i32, i32
  }
  func.func @transform_1(%arg0: i32) -> (i32, i32) {
    %c0_i32 = arith.constant 0 : i32
    %c0_i32_0 = arith.constant 0 : i32
    %c0_i32_1 = arith.constant 0 : i32
    return %c0_i32, %c0_i32_0 : i32, i32
  }
  func.func @transform_2(%arg0: i32) -> (i32, i32) {
    %c0_i32 = arith.constant 0 : i32
    %c0_i32_0 = arith.constant 0 : i32
    %c0_i32_1 = arith.constant 0 : i32
    return %c0_i32, %c0_i32_0 : i32, i32
  }
  func.func @transform_3(%arg0: i32) -> (i32, i32) {
    %c0_i32 = arith.constant 0 : i32
    %c0_i32_0 = arith.constant 0 : i32
    %c0_i32_1 = arith.constant 0 : i32
    return %c0_i32, %c0_i32_0 : i32, i32
  }
  func.func @transform_4(%arg0: i32) -> (i32, i32) {
    %c0_i32 = arith.constant 0 : i32
    %c0_i32_0 = arith.constant 0 : i32
    %c0_i32_1 = arith.constant 0 : i32
    return %c0_i32, %c0_i32_0 : i32, i32
  }
  func.func @transform_5(%arg0: i32) -> (i32, i32) {
    %c0_i32 = arith.constant 0 : i32
    %c0_i32_0 = arith.constant 0 : i32
    %c0_i32_1 = arith.constant 0 : i32
    return %c0_i32, %c0_i32_0 : i32, i32
  }
  func.func @transform_6(%arg0: i32) -> (i32, i32) {
    %c0_i32 = arith.constant 0 : i32
    %c0_i32_0 = arith.constant 0 : i32
    return %arg0, %c0_i32 : i32, i32
  }
}

</mosaic_0001>

<llo_original>
// kernel: tpu_custom_call.1
$region0: #{tpu_custom_call.1}
  #allocation0 [shape = 'u32[]', space=smem, size = 0x4, offset = 0x4, fixed_abs, tag = 'smem constant byte address 0x4 - core index']
  #allocation1 [shape = 'u32[72,128]{1,0:T(1,128)}', space=vmem, size = 0x9000, scoped, tag = 'internal scratch']
  %s0 = inlined_call_operand.hbm [shape: f32[256,896], index: 0, kind: input, shape index: {}]
  %s1 = inlined_call_operand.vmem [shape: f32[896,64], index: 1, kind: input, shape index: {}]
  %s2 = inlined_call_operand.vmem [shape: f32[64,64], index: 2, kind: input, shape index: {}]
  %s3 = inlined_call_operand.vmem [shape: f32[64,64], index: 3, kind: input, shape index: {}]
  %s4 = inlined_call_operand.vmem [shape: f32[64,128], index: 4, kind: input, shape index: {}]
  %s5 = inlined_call_operand.vmem [shape: f32[4,128], index: 5, kind: input, shape index: {}]
  %s6 = inlined_call_operand.hbm [shape: f32[256,128], index: 6, kind: output, shape index: {}]
  %s7 = sld [smem:[#allocation0]]
  $region38: #{tpu_custom_call.1} parent=0
    _
  %s9 = ssub.s32 1, %s7
  %s10 = scalar_select 0, %s9, %s7
  $region1: #{tpu_custom_call.1} parent=0
    #allocation2 [shape = 'u8[917504]{0}', space=vmem, size = 0xe0000, scoped, tag = 'input window, operand 0, single buffered']
    #allocation3 [shape = 's32[1]{0}', space=sflag, size = 0x4, scoped, tag = 'scoped memory for tpu_custom_call.1']
    #allocation4 [shape = 's32[1]{0}', space=sflag, size = 0x4, scoped, tag = 'scoped memory for tpu_custom_call.1']
    #allocation5 [shape = 'u8[131072]{0}', space=vmem, size = 0x20000, scoped, tag = 'output window, operand 0, single buffered']
    %11 = vsyncpa [#allocation3], 0
    %12 = vsyncpa [#allocation4], 0
    // Predicated region
    $region2: #{tpu_custom_call.1} parent=1 // pred_check
      _
    $region3: #{tpu_custom_call.1} parent=1 // pred_check_branch
      %14 = sbr.rel (0) target = $region5
    $region4: #{tpu_custom_call.1} parent=1 // pred_region
      %16 = vsyncadd [#allocation3], 0
      %s17 = sshll.u32 %s0, 4
      %s18 = int_to_ptr.hbm [resolvable:$true] %s17
      %s19 = sshll.u32 [#allocation2], 4
      %s20 = int_to_ptr.vmem [resolvable:$true] %s19
      %25 = dma.hbm_to_vmem [thread:$0]  %s18, 28672, %s20, [#allocation3], 896, 896, 56
    $region5: #{tpu_custom_call.1} parent=1 // pred_fallthru
      _
    // Predicated region
    $region6: #{tpu_custom_call.1} parent=1 // pred_check
      _
    $region7: #{tpu_custom_call.1} parent=1 // pred_check_branch
      %27 = sbr.rel (0) target = $region9
    $region8: #{tpu_custom_call.1} parent=1 // pred_region
      _
    $region9: #{tpu_custom_call.1} parent=1 // pred_fallthru
      _
    // Predicated region
    $region10: #{tpu_custom_call.1} parent=1 // pred_check
      _
    $region11: #{tpu_custom_call.1} parent=1 // pred_check_branch
      %29 = sbr.rel (0) target = $region13
    $region12: #{tpu_custom_call.1} parent=1 // pred_region
      _
    $region13: #{tpu_custom_call.1} parent=1 // pred_fallthru
      _
    // Predicated region
    $region14: #{tpu_custom_call.1} parent=1 // pred_check
      _
    $region15: #{tpu_custom_call.1} parent=1 // pred_check_branch
      %31 = sbr.rel (0) target = $region17
    $region16: #{tpu_custom_call.1} parent=1 // pred_region
      _
    $region17: #{tpu_custom_call.1} parent=1 // pred_fallthru
      _
    // Predicated region
    $region18: #{tpu_custom_call.1} parent=1 // pred_check
      _
    $region19: #{tpu_custom_call.1} parent=1 // pred_check_branch
      %33 = sbr.rel (0) target = $region21
    $region20: #{tpu_custom_call.1} parent=1 // pred_region
      _
    $region21: #{tpu_custom_call.1} parent=1 // pred_fallthru
      _
    // Predicated region
    $region22: #{tpu_custom_call.1} parent=1 // pred_check
      _
    $region23: #{tpu_custom_call.1} parent=1 // pred_check_branch
      %35 = sbr.rel (0) target = $region25
    $region24: #{tpu_custom_call.1} parent=1 // pred_region
      _
    $region25: #{tpu_custom_call.1} parent=1 // pred_fallthru
      _
    // Predicated region
    $region26: #{tpu_custom_call.1} parent=1 // pred_check
      _
    $region27: #{tpu_custom_call.1} parent=1 // pred_check_branch
      %37 = sbr.rel (0) target = $region29
    $region28: #{tpu_custom_call.1} parent=1 // pred_region
      %39 = dma.done [#allocation3], 28672
    $region29: #{tpu_custom_call.1} parent=1 // pred_fallthru
      _
    %v40 = vld [vmem:[%s5] sm:$0x1]
    %v41 = vld [vmem:[%s5 + $0x1] sm:$0x1]
    %v42 = vld [vmem:[%s5 + $0x2] sm:$0x1]
    %v43 = vld [vmem:[%s5 + $0x3] sm:$0x1]
    %v44 = vld [vmem:[#allocation2] sm:$0xff]
    %v45 = vld [vmem:[#allocation2 + $0x8] sm:$0xff]
    %v46 = vld [vmem:[#allocation2 + $0x10] sm:$0xff]
    %v47 = vld [vmem:[#allocation2 + $0x18] sm:$0xff]
    %v48 = vld [vmem:[#allocation2 + $0x20] sm:$0xff]
    %v49 = vld [vmem:[#allocation2 + $0x28] sm:$0xff]
    %v50 = vld [vmem:[#allocation2 + $0x30] sm:$0xff]
    %v51 = vld [vmem:[#allocation2 + $0x38] sm:$0xff]
    %v52 = vld [vmem:[#allocation2 + $0x40] sm:$0xff]
    %v53 = vld [vmem:[#allocation2 + $0x48] sm:$0xff]
    %v54 = vld [vmem:[#allocation2 + $0x50] sm:$0xff]
    %v55 = vld [vmem:[#allocation2 + $0x58] sm:$0xff]
    %v56 = vld [vmem:[#allocation2 + $0x60] sm:$0xff]
    %v57 = vld [vmem:[#allocation2 + $0x68] sm:$0xff]
    %v58 = vld [vmem:[#allocation2 + $0x70] sm:$0xff]
    %v59 = vld [vmem:[#allocation2 + $0x78] sm:$0xff]
    %v60 = vld [vmem:[#allocation2 + $0x80] sm:$0xff]
    %v61 = vld [vmem:[#allocation2 + $0x88] sm:$0xff]
    %v62 = vld [vmem:[#allocation2 + $0x90] sm:$0xff]
    %v63 = vld [vmem:[#allocation2 + $0x98] sm:$0xff]
    %v64 = vld [vmem:[#allocation2 + $0xa0] sm:$0xff]
    %v65 = vld [vmem:[#allocation2 + $0xa8] sm:$0xff]
    %v66 = vld [vmem:[#allocation2 + $0xb0] sm:$0xff]
    %v67 = vld [vmem:[#allocation2 + $0xb8] sm:$0xff]
    %v68 = vld [vmem:[#allocation2 + $0xc0] sm:$0xff]
    %v69 = vld [vmem:[#allocation2 + $0xc8] sm:$0xff]
    %v70 = vld [vmem:[#allocation2 + $0xd0] sm:$0xff]
    %v71 = vld [vmem:[#allocation2 + $0xd8] sm:$0xff]
    %v72 = vld [vmem:[#allocation2 + $0xe0] sm:$0xff]
    %v73 = vld [vmem:[#allocation2 + $0xe8] sm:$0xff]
    %v74 = vld [vmem:[#allocation2 + $0xf0] sm:$0xff]
    %v75 = vld [vmem:[#allocation2 + $0xf8] sm:$0xff]
    %v76 = vld [vmem:[#allocation2 + $0x100] sm:$0xff]
    %v77 = vld [vmem:[#allocation2 + $0x108] sm:$0xff]
    %v78 = vld [vmem:[#allocation2 + $0x110] sm:$0xff]
    %v79 = vld [vmem:[#allocation2 + $0x118] sm:$0xff]
    %v80 = vld [vmem:[#allocation2 + $0x120] sm:$0xff]
    %v81 = vld [vmem:[#allocation2 + $0x128] sm:$0xff]
    %v82 = vld [vmem:[#allocation2 + $0x130] sm:$0xff]
    %v83 = vld [vmem:[#allocation2 + $0x138] sm:$0xff]
    %v84 = vld [vmem:[#allocation2 + $0x140] sm:$0xff]
    %v85 = vld [vmem:[#allocation2 + $0x148] sm:$0xff]
    %v86 = vld [vmem:[#allocation2 + $0x150] sm:$0xff]
    %v87 = vld [vmem:[#allocation2 + $0x158] sm:$0xff]
    %v88 = vld [vmem:[#allocation2 + $0x160] sm:$0xff]
    %v89 = vld [vmem:[#allocation2 + $0x168] sm:$0xff]
    %v90 = vld [vmem:[#allocation2 + $0x170] sm:$0xff]
    %v91 = vld [vmem:[#allocation2 + $0x178] sm:$0xff]
    %v92 = vld [vmem:[#allocation2 + $0x180] sm:$0xff]
    %v93 = vld [vmem:[#allocation2 + $0x188] sm:$0xff]
    %v94 = vld [vmem:[#allocation2 + $0x190] sm:$0xff]
    %v95 = vld [vmem:[#allocation2 + $0x198] sm:$0xff]
    %v96 = vld [vmem:[#allocation2 + $0x1a0] sm:$0xff]
    %v97 = vld [vmem:[#allocation2 + $0x1a8] sm:$0xff]
    %v98 = vld [vmem:[#allocation2 + $0x1b0] sm:$0xff]
    %v99 = vld [vmem:[#allocation2 + $0x1b8] sm:$0xff]
    %v100 = vld [vmem:[#allocation2 + $0x1c0] sm:$0xff]
    %v101 = vld [vmem:[#allocation2 + $0x1c8] sm:$0xff]
    %v102 = vld [vmem:[#allocation2 + $0x1d0] sm:$0xff]
    %v103 = vld [vmem:[#allocation2 + $0x1d8] sm:$0xff]
    %v104 = vld [vmem:[#allocation2 + $0x1e0] sm:$0xff]
    %v105 = vld [vmem:[#allocation2 + $0x1e8] sm:$0xff]
    %v106 = vld [vmem:[#allocation2 + $0x1f0] sm:$0xff]
    %v107 = vld [vmem:[#allocation2 + $0x1f8] sm:$0xff]
    %v108 = vld [vmem:[#allocation2 + $0x200] sm:$0xff]
    %v109 = vld [vmem:[#allocation2 + $0x208] sm:$0xff]
    %v110 = vld [vmem:[#allocation2 + $0x210] sm:$0xff]
    %v111 = vld [vmem:[#allocation2 + $0x218] sm:$0xff]
    %v112 = vld [vmem:[#allocation2 + $0x220] sm:$0xff]
    %v113 = vld [vmem:[#allocation2 + $0x228] sm:$0xff]
    %v114 = vld [vmem:[#allocation2 + $0x230] sm:$0xff]
    %v115 = vld [vmem:[#allocation2 + $0x238] sm:$0xff]
    %v116 = vld [vmem:[#allocation2 + $0x240] sm:$0xff]
    %v117 = vld [vmem:[#allocation2 + $0x248] sm:$0xff]
    %v118 = vld [vmem:[#allocation2 + $0x250] sm:$0xff]
    %v119 = vld [vmem:[#allocation2 + $0x258] sm:$0xff]
    %v120 = vld [vmem:[#allocation2 + $0x260] sm:$0xff]
    %v121 = vld [vmem:[#allocation2 + $0x268] sm:$0xff]
    %v122 = vld [vmem:[#allocation2 + $0x270] sm:$0xff]
    %v123 = vld [vmem:[#allocation2 + $0x278] sm:$0xff]
    %v124 = vld [vmem:[#allocation2 + $0x280] sm:$0xff]
    %v125 = vld [vmem:[#allocation2 + $0x288] sm:$0xff]
    %v126 = vld [vmem:[#allocation2 + $0x290] sm:$0xff]
    %v127 = vld [vmem:[#allocation2 + $0x298] sm:$0xff]
    %v128 = vld [vmem:[#allocation2 + $0x2a0] sm:$0xff]
    %v129 = vld [vmem:[#allocation2 + $0x2a8] sm:$0xff]
    %v130 = vld [vmem:[#allocation2 + $0x2b0] sm:$0xff]
    %v131 = vld [vmem:[#allocation2 + $0x2b8] sm:$0xff]
    %v132 = vld [vmem:[#allocation2 + $0x2c0] sm:$0xff]
    %v133 = vld [vmem:[#allocation2 + $0x2c8] sm:$0xff]
    %v134 = vld [vmem:[#allocation2 + $0x2d0] sm:$0xff]
    %v135 = vld [vmem:[#allocation2 + $0x2d8] sm:$0xff]
    %v136 = vld [vmem:[#allocation2 + $0x2e0] sm:$0xff]
    %v137 = vld [vmem:[#allocation2 + $0x2e8] sm:$0xff]
    %v138 = vld [vmem:[#allocation2 + $0x2f0] sm:$0xff]
    %v139 = vld [vmem:[#allocation2 + $0x2f8] sm:$0xff]
    %v140 = vld [vmem:[#allocation2 + $0x300] sm:$0xff]
    %v141 = vld [vmem:[#allocation2 + $0x308] sm:$0xff]
    %v142 = vld [vmem:[#allocation2 + $0x310] sm:$0xff]
    %v143 = vld [vmem:[#allocation2 + $0x318] sm:$0xff]
    %v144 = vld [vmem:[#allocation2 + $0x320] sm:$0xff]
    %v145 = vld [vmem:[#allocation2 + $0x328] sm:$0xff]
    %v146 = vld [vmem:[#allocation2 + $0x330] sm:$0xff]
    %v147 = vld [vmem:[#allocation2 + $0x338] sm:$0xff]
    %v148 = vld [vmem:[#allocation2 + $0x340] sm:$0xff]
    %v149 = vld [vmem:[#allocation2 + $0x348] sm:$0xff]
    %v150 = vld [vmem:[#allocation2 + $0x350] sm:$0xff]
    %v151 = vld [vmem:[#allocation2 + $0x358] sm:$0xff]
    %v152 = vld [vmem:[#allocation2 + $0x360] sm:$0xff]
    %v153 = vld [vmem:[#allocation2 + $0x368] sm:$0xff]
    %v154 = vld [vmem:[#allocation2 + $0x370] sm:$0xff]
    %v155 = vld [vmem:[#allocation2 + $0x378] sm:$0xff]
    %v156 = vld [vmem:[#allocation2 + $0x380] sm:$0xff]
    %v157 = vld [vmem:[#allocation2 + $0x388] sm:$0xff]
    %v158 = vld [vmem:[#allocation2 + $0x390] sm:$0xff]
    %v159 = vld [vmem:[#allocation2 + $0x398] sm:$0xff]
    %v160 = vld [vmem:[#allocation2 + $0x3a0] sm:$0xff]
    %v161 = vld [vmem:[#allocation2 + $0x3a8] sm:$0xff]
    %v162 = vld [vmem:[#allocation2 + $0x3b0] sm:$0xff]
    %v163 = vld [vmem:[#allocation2 + $0x3b8] sm:$0xff]
    %v164 = vld [vmem:[#allocation2 + $0x3c0] sm:$0xff]
    %v165 = vld [vmem:[#allocation2 + $0x3c8] sm:$0xff]
    %v166 = vld [vmem:[#allocation2 + $0x3d0] sm:$0xff]
    %v167 = vld [vmem:[#allocation2 + $0x3d8] sm:$0xff]
    %v168 = vld [vmem:[#allocation2 + $0x3e0] sm:$0xff]
    %v169 = vld [vmem:[#allocation2 + $0x3e8] sm:$0xff]
    %v170 = vld [vmem:[#allocation2 + $0x3f0] sm:$0xff]
    %v171 = vld [vmem:[#allocation2 + $0x3f8] sm:$0xff]
    %v172 = vld [vmem:[#allocation2 + $0x400] sm:$0xff]
    %v173 = vld [vmem:[#allocation2 + $0x408] sm:$0xff]
    %v174 = vld [vmem:[#allocation2 + $0x410] sm:$0xff]
    %v175 = vld [vmem:[#allocation2 + $0x418] sm:$0xff]
    %v176 = vld [vmem:[#allocation2 + $0x420] sm:$0xff]
    %v177 = vld [vmem:[#allocation2 + $0x428] sm:$0xff]
    %v178 = vld [vmem:[#allocation2 + $0x430] sm:$0xff]
    %v179 = vld [vmem:[#allocation2 + $0x438] sm:$0xff]
    %v180 = vld [vmem:[#allocation2 + $0x440] sm:$0xff]
    %v181 = vld [vmem:[#allocation2 + $0x448] sm:$0xff]
    %v182 = vld [vmem:[#allocation2 + $0x450] sm:$0xff]
    %v183 = vld [vmem:[#allocation2 + $0x458] sm:$0xff]
    %v184 = vld [vmem:[#allocation2 + $0x460] sm:$0xff]
    %v185 = vld [vmem:[#allocation2 + $0x468] sm:$0xff]
    %v186 = vld [vmem:[#allocation2 + $0x470] sm:$0xff]
    %v187 = vld [vmem:[#allocation2 + $0x478] sm:$0xff]
    %v188 = vld [vmem:[#allocation2 + $0x480] sm:$0xff]
    %v189 = vld [vmem:[#allocation2 + $0x488] sm:$0xff]
    %v190 = vld [vmem:[#allocation2 + $0x490] sm:$0xff]
    %v191 = vld [vmem:[#allocation2 + $0x498] sm:$0xff]
    %v192 = vld [vmem:[#allocation2 + $0x4a0] sm:$0xff]
    %v193 = vld [vmem:[#allocation2 + $0x4a8] sm:$0xff]
    %v194 = vld [vmem:[#allocation2 + $0x4b0] sm:$0xff]
    %v195 = vld [vmem:[#allocation2 + $0x4b8] sm:$0xff]
    %v196 = vld [vmem:[#allocation2 + $0x4c0] sm:$0xff]
    %v197 = vld [vmem:[#allocation2 + $0x4c8] sm:$0xff]
    %v198 = vld [vmem:[#allocation2 + $0x4d0] sm:$0xff]
    %v199 = vld [vmem:[#allocation2 + $0x4d8] sm:$0xff]
    %v200 = vld [vmem:[#allocation2 + $0x4e0] sm:$0xff]
    %v201 = vld [vmem:[#allocation2 + $0x4e8] sm:$0xff]
    %v202 = vld [vmem:[#allocation2 + $0x4f0] sm:$0xff]
    %v203 = vld [vmem:[#allocation2 + $0x4f8] sm:$0xff]
    %v204 = vld [vmem:[#allocation2 + $0x500] sm:$0xff]
    %v205 = vld [vmem:[#allocation2 + $0x508] sm:$0xff]
    %v206 = vld [vmem:[#allocation2 + $0x510] sm:$0xff]
    %v207 = vld [vmem:[#allocation2 + $0x518] sm:$0xff]
    %v208 = vld [vmem:[#allocation2 + $0x520] sm:$0xff]
    %v209 = vld [vmem:[#allocation2 + $0x528] sm:$0xff]
    %v210 = vld [vmem:[#allocation2 + $0x530] sm:$0xff]
    %v211 = vld [vmem:[#allocation2 + $0x538] sm:$0xff]
    %v212 = vld [vmem:[#allocation2 + $0x540] sm:$0xff]
    %v213 = vld [vmem:[#allocation2 + $0x548] sm:$0xff]
    %v214 = vld [vmem:[#allocation2 + $0x550] sm:$0xff]
    %v215 = vld [vmem:[#allocation2 + $0x558] sm:$0xff]
    %v216 = vld [vmem:[#allocation2 + $0x560] sm:$0xff]
    %v217 = vld [vmem:[#allocation2 + $0x568] sm:$0xff]
    %v218 = vld [vmem:[#allocation2 + $0x570] sm:$0xff]
    %v219 = vld [vmem:[#allocation2 + $0x578] sm:$0xff]
    %v220 = vld [vmem:[#allocation2 + $0x580] sm:$0xff]
    %v221 = vld [vmem:[#allocation2 + $0x588] sm:$0xff]
    %v222 = vld [vmem:[#allocation2 + $0x590] sm:$0xff]
    %v223 = vld [vmem:[#allocation2 + $0x598] sm:$0xff]
    %v224 = vld [vmem:[#allocation2 + $0x5a0] sm:$0xff]
    %v225 = vld [vmem:[#allocation2 + $0x5a8] sm:$0xff]
    %v226 = vld [vmem:[#allocation2 + $0x5b0] sm:$0xff]
    %v227 = vld [vmem:[#allocation2 + $0x5b8] sm:$0xff]
    %v228 = vld [vmem:[#allocation2 + $0x5c0] sm:$0xff]
    %v229 = vld [vmem:[#allocation2 + $0x5c8] sm:$0xff]
    %v230 = vld [vmem:[#allocation2 + $0x5d0] sm:$0xff]
    %v231 = vld [vmem:[#allocation2 + $0x5d8] sm:$0xff]
    %v232 = vld [vmem:[#allocation2 + $0x5e0] sm:$0xff]
    %v233 = vld [vmem:[#allocation2 + $0x5e8] sm:$0xff]
    %v234 = vld [vmem:[#allocation2 + $0x5f0] sm:$0xff]
    %v235 = vld [vmem:[#allocation2 + $0x5f8] sm:$0xff]
    %v236 = vld [vmem:[#allocation2 + $0x600] sm:$0xff]
    %v237 = vld [vmem:[#allocation2 + $0x608] sm:$0xff]
    %v238 = vld [vmem:[#allocation2 + $0x610] sm:$0xff]
    %v239 = vld [vmem:[#allocation2 + $0x618] sm:$0xff]
    %v240 = vld [vmem:[#allocation2 + $0x620] sm:$0xff]
    %v241 = vld [vmem:[#allocation2 + $0x628] sm:$0xff]
    %v242 = vld [vmem:[#allocation2 + $0x630] sm:$0xff]
    %v243 = vld [vmem:[#allocation2 + $0x638] sm:$0xff]
    %v244 = vld [vmem:[#allocation2 + $0x640] sm:$0xff]
    %v245 = vld [vmem:[#allocation2 + $0x648] sm:$0xff]
    %v246 = vld [vmem:[#allocation2 + $0x650] sm:$0xff]
    %v247 = vld [vmem:[#allocation2 + $0x658] sm:$0xff]
    %v248 = vld [vmem:[#allocation2 + $0x660] sm:$0xff]
    %v249 = vld [vmem:[#allocation2 + $0x668] sm:$0xff]
    %v250 = vld [vmem:[#allocation2 + $0x670] sm:$0xff]
    %v251 = vld [vmem:[#allocation2 + $0x678] sm:$0xff]
    %v252 = vld [vmem:[#allocation2 + $0x680] sm:$0xff]
    %v253 = vld [vmem:[#allocation2 + $0x688] sm:$0xff]
    %v254 = vld [vmem:[#allocation2 + $0x690] sm:$0xff]
    %v255 = vld [vmem:[#allocation2 + $0x698] sm:$0xff]
    %v256 = vld [vmem:[#allocation2 + $0x6a0] sm:$0xff]
    %v257 = vld [vmem:[#allocation2 + $0x6a8] sm:$0xff]
    %v258 = vld [vmem:[#allocation2 + $0x6b0] sm:$0xff]
    %v259 = vld [vmem:[#allocation2 + $0x6b8] sm:$0xff]
    %v260 = vld [vmem:[#allocation2 + $0x6c0] sm:$0xff]
    %v261 = vld [vmem:[#allocation2 + $0x6c8] sm:$0xff]
    %v262 = vld [vmem:[#allocation2 + $0x6d0] sm:$0xff]
    %v263 = vld [vmem:[#allocation2 + $0x6d8] sm:$0xff]
    %v264 = vld [vmem:[#allocation2 + $0x6e0] sm:$0xff]
    %v265 = vld [vmem:[#allocation2 + $0x6e8] sm:$0xff]
    %v266 = vld [vmem:[#allocation2 + $0x6f0] sm:$0xff]
    %v267 = vld [vmem:[#allocation2 + $0x6f8] sm:$0xff]
    %v268 = vld [vmem:[%s1] sm:$0xff]
    %v269 = vld [vmem:[%s1 + $0x8] sm:$0xff]
    %v270 = vld [vmem:[%s1 + $0x10] sm:$0xff]
    %v271 = vld [vmem:[%s1 + $0x18] sm:$0xff]
    %v272 = vld [vmem:[%s1 + $0x20] sm:$0xff]
    %v273 = vld [vmem:[%s1 + $0x28] sm:$0xff]
    %v274 = vld [vmem:[%s1 + $0x30] sm:$0xff]
    %v275 = vld [vmem:[%s1 + $0x38] sm:$0xff]
    %v276 = vld [vmem:[%s1 + $0x40] sm:$0xff]
    %v277 = vld [vmem:[%s1 + $0x48] sm:$0xff]
    %v278 = vld [vmem:[%s1 + $0x50] sm:$0xff]
    %v279 = vld [vmem:[%s1 + $0x58] sm:$0xff]
    %v280 = vld [vmem:[%s1 + $0x60] sm:$0xff]
    %v281 = vld [vmem:[%s1 + $0x68] sm:$0xff]
    %v282 = vld [vmem:[%s1 + $0x70] sm:$0xff]
    %v283 = vld [vmem:[%s1 + $0x78] sm:$0xff]
    %v284 = vld [vmem:[%s1 + $0x80] sm:$0xff]
    %v285 = vld [vmem:[%s1 + $0x88] sm:$0xff]
    %v286 = vld [vmem:[%s1 + $0x90] sm:$0xff]
    %v287 = vld [vmem:[%s1 + $0x98] sm:$0xff]
    %v288 = vld [vmem:[%s1 + $0xa0] sm:$0xff]
    %v289 = vld [vmem:[%s1 + $0xa8] sm:$0xff]
    %v290 = vld [vmem:[%s1 + $0xb0] sm:$0xff]
    %v291 = vld [vmem:[%s1 + $0xb8] sm:$0xff]
    %v292 = vld [vmem:[%s1 + $0xc0] sm:$0xff]
    %v293 = vld [vmem:[%s1 + $0xc8] sm:$0xff]
    %v294 = vld [vmem:[%s1 + $0xd0] sm:$0xff]
    %v295 = vld [vmem:[%s1 + $0xd8] sm:$0xff]
    %v296 = vld [vmem:[%s1 + $0xe0] sm:$0xff]
    %v297 = vld [vmem:[%s1 + $0xe8] sm:$0xff]
    %v298 = vld [vmem:[%s1 + $0xf0] sm:$0xff]
    %v299 = vld [vmem:[%s1 + $0xf8] sm:$0xff]
    %v300 = vld [vmem:[%s1 + $0x100] sm:$0xff]
    %v301 = vld [vmem:[%s1 + $0x108] sm:$0xff]
    %v302 = vld [vmem:[%s1 + $0x110] sm:$0xff]
    %v303 = vld [vmem:[%s1 + $0x118] sm:$0xff]
    %v304 = vld [vmem:[%s1 + $0x120] sm:$0xff]
    %v305 = vld [vmem:[%s1 + $0x128] sm:$0xff]
    %v306 = vld [vmem:[%s1 + $0x130] sm:$0xff]
    %v307 = vld [vmem:[%s1 + $0x138] sm:$0xff]
    %v308 = vld [vmem:[%s1 + $0x140] sm:$0xff]
    %v309 = vld [vmem:[%s1 + $0x148] sm:$0xff]
    %v310 = vld [vmem:[%s1 + $0x150] sm:$0xff]
    %v311 = vld [vmem:[%s1 + $0x158] sm:$0xff]
    %v312 = vld [vmem:[%s1 + $0x160] sm:$0xff]
    %v313 = vld [vmem:[%s1 + $0x168] sm:$0xff]
    %v314 = vld [vmem:[%s1 + $0x170] sm:$0xff]
    %v315 = vld [vmem:[%s1 + $0x178] sm:$0xff]
    %v316 = vld [vmem:[%s1 + $0x180] sm:$0xff]
    %v317 = vld [vmem:[%s1 + $0x188] sm:$0xff]
    %v318 = vld [vmem:[%s1 + $0x190] sm:$0xff]
    %v319 = vld [vmem:[%s1 + $0x198] sm:$0xff]
    %v320 = vld [vmem:[%s1 + $0x1a0] sm:$0xff]
    %v321 = vld [vmem:[%s1 + $0x1a8] sm:$0xff]
    %v322 = vld [vmem:[%s1 + $0x1b0] sm:$0xff]
    %v323 = vld [vmem:[%s1 + $0x1b8] sm:$0xff]
    %v324 = vld [vmem:[%s1 + $0x1c0] sm:$0xff]
    %v325 = vld [vmem:[%s1 + $0x1c8] sm:$0xff]
    %v326 = vld [vmem:[%s1 + $0x1d0] sm:$0xff]
    %v327 = vld [vmem:[%s1 + $0x1d8] sm:$0xff]
    %v328 = vld [vmem:[%s1 + $0x1e0] sm:$0xff]
    %v329 = vld [vmem:[%s1 + $0x1e8] sm:$0xff]
    %v330 = vld [vmem:[%s1 + $0x1f0] sm:$0xff]
    %v331 = vld [vmem:[%s1 + $0x1f8] sm:$0xff]
    %v332 = vld [vmem:[%s1 + $0x200] sm:$0xff]
    %v333 = vld [vmem:[%s1 + $0x208] sm:$0xff]
    %v334 = vld [vmem:[%s1 + $0x210] sm:$0xff]
    %v335 = vld [vmem:[%s1 + $0x218] sm:$0xff]
    %v336 = vld [vmem:[%s1 + $0x220] sm:$0xff]
    %v337 = vld [vmem:[%s1 + $0x228] sm:$0xff]
    %v338 = vld [vmem:[%s1 + $0x230] sm:$0xff]
    %v339 = vld [vmem:[%s1 + $0x238] sm:$0xff]
    %v340 = vld [vmem:[%s1 + $0x240] sm:$0xff]
    %v341 = vld [vmem:[%s1 + $0x248] sm:$0xff]
    %v342 = vld [vmem:[%s1 + $0x250] sm:$0xff]
    %v343 = vld [vmem:[%s1 + $0x258] sm:$0xff]
    %v344 = vld [vmem:[%s1 + $0x260] sm:$0xff]
    %v345 = vld [vmem:[%s1 + $0x268] sm:$0xff]
    %v346 = vld [vmem:[%s1 + $0x270] sm:$0xff]
    %v347 = vld [vmem:[%s1 + $0x278] sm:$0xff]
    %v348 = vld [vmem:[%s1 + $0x280] sm:$0xff]
    %v349 = vld [vmem:[%s1 + $0x288] sm:$0xff]
    %v350 = vld [vmem:[%s1 + $0x290] sm:$0xff]
    %v351 = vld [vmem:[%s1 + $0x298] sm:$0xff]
    %v352 = vld [vmem:[%s1 + $0x2a0] sm:$0xff]
    %v353 = vld [vmem:[%s1 + $0x2a8] sm:$0xff]
    %v354 = vld [vmem:[%s1 + $0x2b0] sm:$0xff]
    %v355 = vld [vmem:[%s1 + $0x2b8] sm:$0xff]
    %v356 = vld [vmem:[%s1 + $0x2c0] sm:$0xff]
    %v357 = vld [vmem:[%s1 + $0x2c8] sm:$0xff]
    %v358 = vld [vmem:[%s1 + $0x2d0] sm:$0xff]
    %v359 = vld [vmem:[%s1 + $0x2d8] sm:$0xff]
    %v360 = vld [vmem:[%s1 + $0x2e0] sm:$0xff]
    %v361 = vld [vmem:[%s1 + $0x2e8] sm:$0xff]
    %v362 = vld [vmem:[%s1 + $0x2f0] sm:$0xff]
    %v363 = vld [vmem:[%s1 + $0x2f8] sm:$0xff]
    %v364 = vld [vmem:[%s1 + $0x300] sm:$0xff]
    %v365 = vld [vmem:[%s1 + $0x308] sm:$0xff]
    %v366 = vld [vmem:[%s1 + $0x310] sm:$0xff]
    %v367 = vld [vmem:[%s1 + $0x318] sm:$0xff]
    %v368 = vld [vmem:[%s1 + $0x320] sm:$0xff]
    %v369 = vld [vmem:[%s1 + $0x328] sm:$0xff]
    %v370 = vld [vmem:[%s1 + $0x330] sm:$0xff]
    %v371 = vld [vmem:[%s1 + $0x338] sm:$0xff]
    %v372 = vld [vmem:[%s1 + $0x340] sm:$0xff]
    %v373 = vld [vmem:[%s1 + $0x348] sm:$0xff]
    %v374 = vld [vmem:[%s1 + $0x350] sm:$0xff]
    %v375 = vld [vmem:[%s1 + $0x358] sm:$0xff]
    %v376 = vld [vmem:[%s1 + $0x360] sm:$0xff]
    %v377 = vld [vmem:[%s1 + $0x368] sm:$0xff]
    %v378 = vld [vmem:[%s1 + $0x370] sm:$0xff]
    %v379 = vld [vmem:[%s1 + $0x378] sm:$0xff]
    %v380 = vperm.slane %v40, 0
    %381 = vmatpush.msra.mxu0 %v283
    %382 = vmatpush.msra.mxu0 %v282
    %383 = vmatpush.msra.mxu0 %v281
    %384 = vmatpush.msra.mxu0 %v280
    %385 = vmatpush.msra.mxu0 %v279
    %386 = vmatpush.msra.mxu0 %v278
    %387 = vmatpush.msra.mxu0 %v277
    %388 = vmatpush.msra.mxu0 %v276
    %389 = vmatpush.msra.mxu0 %v275
    %390 = vmatpush.msra.mxu0 %v274
    %391 = vmatpush.msra.mxu0 %v273
    %392 = vmatpush.msra.mxu0 %v272
    %393 = vmatpush.msra.mxu0 %v271
    %394 = vmatpush.msra.mxu0 %v270
    %395 = vmatpush.msra.mxu0 %v269
    %396 = vmatpush.msra.mxu0 %v268
    %397 = vmatmul.f32.gmra.mxu0 %v44
    %v398 = vpop.f32.mrf.mxu0
    %v399 = vadd.f32 %v380, %v398
    %400 = vmatmul.f32.gmra.mxu0 %v51
    %v401 = vpop.f32.mrf.mxu0
    %v402 = vadd.f32 %v380, %v401
    %403 = vmatmul.f32.gmra.mxu0 %v58
    %v404 = vpop.f32.mrf.mxu0
    %v405 = vadd.f32 %v380, %v404
    %406 = vmatmul.f32.gmra.mxu0 %v65
    %v407 = vpop.f32.mrf.mxu0
    %v408 = vadd.f32 %v380, %v407
    %409 = vmatmul.f32.gmra.mxu0 %v72
    %v410 = vpop.f32.mrf.mxu0
    %v411 = vadd.f32 %v380, %v410
    %412 = vmatmul.f32.gmra.mxu0 %v79
    %v413 = vpop.f32.mrf.mxu0
    %v414 = vadd.f32 %v380, %v413
    %415 = vmatmul.f32.gmra.mxu0 %v86
    %v416 = vpop.f32.mrf.mxu0
    %v417 = vadd.f32 %v380, %v416
    %418 = vmatmul.f32.gmra.mxu0 %v93
    %v419 = vpop.f32.mrf.mxu0
    %v420 = vadd.f32 %v380, %v419
    %421 = vmatmul.f32.gmra.mxu0 %v100
    %v422 = vpop.f32.mrf.mxu0
    %v423 = vadd.f32 %v380, %v422
    %424 = vmatmul.f32.gmra.mxu0 %v107
    %v425 = vpop.f32.mrf.mxu0
    %v426 = vadd.f32 %v380, %v425
    %427 = vmatmul.f32.gmra.mxu0 %v114
    %v428 = vpop.f32.mrf.mxu0
    %v429 = vadd.f32 %v380, %v428
    %430 = vmatmul.f32.gmra.mxu0 %v121
    %v431 = vpop.f32.mrf.mxu0
    %v432 = vadd.f32 %v380, %v431
    %433 = vmatmul.f32.gmra.mxu0 %v128
    %v434 = vpop.f32.mrf.mxu0
    %v435 = vadd.f32 %v380, %v434
    %436 = vmatmul.f32.gmra.mxu0 %v135
    %v437 = vpop.f32.mrf.mxu0
    %v438 = vadd.f32 %v380, %v437
    %439 = vmatmul.f32.gmra.mxu0 %v142
    %v440 = vpop.f32.mrf.mxu0
    %v441 = vadd.f32 %v380, %v440
    %442 = vmatmul.f32.gmra.mxu0 %v149
    %v443 = vpop.f32.mrf.mxu0
    %v444 = vadd.f32 %v380, %v443
    %445 = vmatmul.f32.gmra.mxu0 %v156
    %v446 = vpop.f32.mrf.mxu0
    %v447 = vadd.f32 %v380, %v446
    %448 = vmatmul.f32.gmra.mxu0 %v163
    %v449 = vpop.f32.mrf.mxu0
    %v450 = vadd.f32 %v380, %v449
    %451 = vmatmul.f32.gmra.mxu0 %v170
    %v452 = vpop.f32.mrf.mxu0
    %v453 = vadd.f32 %v380, %v452
    %454 = vmatmul.f32.gmra.mxu0 %v177
    %v455 = vpop.f32.mrf.mxu0
    %v456 = vadd.f32 %v380, %v455
    %457 = vmatmul.f32.gmra.mxu0 %v184
    %v458 = vpop.f32.mrf.mxu0
    %v459 = vadd.f32 %v380, %v458
    %460 = vmatmul.f32.gmra.mxu0 %v191
    %v461 = vpop.f32.mrf.mxu0
    %v462 = vadd.f32 %v380, %v461
    %463 = vmatmul.f32.gmra.mxu0 %v198
    %v464 = vpop.f32.mrf.mxu0
    %v465 = vadd.f32 %v380, %v464
    %466 = vmatmul.f32.gmra.mxu0 %v205
    %v467 = vpop.f32.mrf.mxu0
    %v468 = vadd.f32 %v380, %v467
    %469 = vmatmul.f32.gmra.mxu0 %v212
    %v470 = vpop.f32.mrf.mxu0
    %v471 = vadd.f32 %v380, %v470
    %472 = vmatmul.f32.gmra.mxu0 %v219
    %v473 = vpop.f32.mrf.mxu0
    %v474 = vadd.f32 %v380, %v473
    %475 = vmatmul.f32.gmra.mxu0 %v226
    %v476 = vpop.f32.mrf.mxu0
    %v477 = vadd.f32 %v380, %v476
    %478 = vmatmul.f32.gmra.mxu0 %v233
    %v479 = vpop.f32.mrf.mxu0
    %v480 = vadd.f32 %v380, %v479
    %481 = vmatmul.f32.gmra.mxu0 %v240
    %v482 = vpop.f32.mrf.mxu0
    %v483 = vadd.f32 %v380, %v482
    %484 = vmatmul.f32.gmra.mxu0 %v247
    %v485 = vpop.f32.mrf.mxu0
    %v486 = vadd.f32 %v380, %v485
    %487 = vmatmul.f32.gmra.mxu0 %v254
    %v488 = vpop.f32.mrf.mxu0
    %v489 = vadd.f32 %v380, %v488
    %490 = vmatmul.f32.gmra.mxu0 %v261
    %v491 = vpop.f32.mrf.mxu0
    %v492 = vadd.f32 %v380, %v491
    %493 = vdwg.mxu0
    %494 = vmatpush.msra.mxu0 %v299
    %495 = vmatpush.msra.mxu0 %v298
    %496 = vmatpush.msra.mxu0 %v297
    %497 = vmatpush.msra.mxu0 %v296
    %498 = vmatpush.msra.mxu0 %v295
    %499 = vmatpush.msra.mxu0 %v294
    %500 = vmatpush.msra.mxu0 %v293
    %501 = vmatpush.msra.mxu0 %v292
    %502 = vmatpush.msra.mxu0 %v291
    %503 = vmatpush.msra.mxu0 %v290
    %504 = vmatpush.msra.mxu0 %v289
    %505 = vmatpush.msra.mxu0 %v288
    %506 = vmatpush.msra.mxu0 %v287
    %507 = vmatpush.msra.mxu0 %v286
    %508 = vmatpush.msra.mxu0 %v285
    %509 = vmatpush.msra.mxu0 %v284
    %510 = vmatmul.f32.gmra.mxu0 %v45
    %v511 = vpop.f32.mrf.mxu0
    %v512 = vadd.f32 %v399, %v511
    %513 = vmatmul.f32.gmra.mxu0 %v52
    %v514 = vpop.f32.mrf.mxu0
    %v515 = vadd.f32 %v402, %v514
    %516 = vmatmul.f32.gmra.mxu0 %v59
    %v517 = vpop.f32.mrf.mxu0
    %v518 = vadd.f32 %v405, %v517
    %519 = vmatmul.f32.gmra.mxu0 %v66
    %v520 = vpop.f32.mrf.mxu0
    %v521 = vadd.f32 %v408, %v520
    %522 = vmatmul.f32.gmra.mxu0 %v73
    %v523 = vpop.f32.mrf.mxu0
    %v524 = vadd.f32 %v411, %v523
    %525 = vmatmul.f32.gmra.mxu0 %v80
    %v526 = vpop.f32.mrf.mxu0
    %v527 = vadd.f32 %v414, %v526
    %528 = vmatmul.f32.gmra.mxu0 %v87
    %v529 = vpop.f32.mrf.mxu0
    %v530 = vadd.f32 %v417, %v529
    %531 = vmatmul.f32.gmra.mxu0 %v94
    %v532 = vpop.f32.mrf.mxu0
    %v533 = vadd.f32 %v420, %v532
    %534 = vmatmul.f32.gmra.mxu0 %v101
    %v535 = vpop.f32.mrf.mxu0
    %v536 = vadd.f32 %v423, %v535
    %537 = vmatmul.f32.gmra.mxu0 %v108
    %v538 = vpop.f32.mrf.mxu0
    %v539 = vadd.f32 %v426, %v538
    %540 = vmatmul.f32.gmra.mxu0 %v115
    %v541 = vpop.f32.mrf.mxu0
    %v542 = vadd.f32 %v429, %v541
    %543 = vmatmul.f32.gmra.mxu0 %v122
    %v544 = vpop.f32.mrf.mxu0
    %v545 = vadd.f32 %v432, %v544
    %546 = vmatmul.f32.gmra.mxu0 %v129
    %v547 = vpop.f32.mrf.mxu0
    %v548 = vadd.f32 %v435, %v547
    %549 = vmatmul.f32.gmra.mxu0 %v136
    %v550 = vpop.f32.mrf.mxu0
    %v551 = vadd.f32 %v438, %v550
    %552 = vmatmul.f32.gmra.mxu0 %v143
    %v553 = vpop.f32.mrf.mxu0
    %v554 = vadd.f32 %v441, %v553
    %555 = vmatmul.f32.gmra.mxu0 %v150
    %v556 = vpop.f32.mrf.mxu0
    %v557 = vadd.f32 %v444, %v556
    %558 = vmatmul.f32.gmra.mxu0 %v157
    %v559 = vpop.f32.mrf.mxu0
    %v560 = vadd.f32 %v447, %v559
    %561 = vmatmul.f32.gmra.mxu0 %v164
    %v562 = vpop.f32.mrf.mxu0
    %v563 = vadd.f32 %v450, %v562
    %564 = vmatmul.f32.gmra.mxu0 %v171
    %v565 = vpop.f32.mrf.mxu0
    %v566 = vadd.f32 %v453, %v565
    %567 = vmatmul.f32.gmra.mxu0 %v178
    %v568 = vpop.f32.mrf.mxu0
    %v569 = vadd.f32 %v456, %v568
    %570 = vmatmul.f32.gmra.mxu0 %v185
    %v571 = vpop.f32.mrf.mxu0
    %v572 = vadd.f32 %v459, %v571
    %573 = vmatmul.f32.gmra.mxu0 %v192
    %v574 = vpop.f32.mrf.mxu0
    %v575 = vadd.f32 %v462, %v574
    %576 = vmatmul.f32.gmra.mxu0 %v199
    %v577 = vpop.f32.mrf.mxu0
    %v578 = vadd.f32 %v465, %v577
    %579 = vmatmul.f32.gmra.mxu0 %v206
    %v580 = vpop.f32.mrf.mxu0
    %v581 = vadd.f32 %v468, %v580
    %582 = vmatmul.f32.gmra.mxu0 %v213
    %v583 = vpop.f32.mrf.mxu0
    %v584 = vadd.f32 %v471, %v583
    %585 = vmatmul.f32.gmra.mxu0 %v220
    %v586 = vpop.f32.mrf.mxu0
    %v587 = vadd.f32 %v474, %v586
    %588 = vmatmul.f32.gmra.mxu0 %v227
    %v589 = vpop.f32.mrf.mxu0
    %v590 = vadd.f32 %v477, %v589
    %591 = vmatmul.f32.gmra.mxu0 %v234
    %v592 = vpop.f32.mrf.mxu0
    %v593 = vadd.f32 %v480, %v592
    %594 = vmatmul.f32.gmra.mxu0 %v241
    %v595 = vpop.f32.mrf.mxu0
    %v596 = vadd.f32 %v483, %v595
    %597 = vmatmul.f32.gmra.mxu0 %v248
    %v598 = vpop.f32.mrf.mxu0
    %v599 = vadd.f32 %v486, %v598
    %600 = vmatmul.f32.gmra.mxu0 %v255
    %v601 = vpop.f32.mrf.mxu0
    %v602 = vadd.f32 %v489, %v601
    %603 = vmatmul.f32.gmra.mxu0 %v262
    %v604 = vpop.f32.mrf.mxu0
    %v605 = vadd.f32 %v492, %v604
    %606 = vdwg.mxu0
    %607 = vmatpush.msra.mxu0 %v315
    %608 = vmatpush.msra.mxu0 %v314
    %609 = vmatpush.msra.mxu0 %v313
    %610 = vmatpush.msra.mxu0 %v312
    %611 = vmatpush.msra.mxu0 %v311
    %612 = vmatpush.msra.mxu0 %v310
    %613 = vmatpush.msra.mxu0 %v309
    %614 = vmatpush.msra.mxu0 %v308
    %615 = vmatpush.msra.mxu0 %v307
    %616 = vmatpush.msra.mxu0 %v306
    %617 = vmatpush.msra.mxu0 %v305
    %618 = vmatpush.msra.mxu0 %v304
    %619 = vmatpush.msra.mxu0 %v303
    %620 = vmatpush.msra.mxu0 %v302
    %621 = vmatpush.msra.mxu0 %v301
    %622 = vmatpush.msra.mxu0 %v300
    %623 = vmatmul.f32.gmra.mxu0 %v46
    %v624 = vpop.f32.mrf.mxu0
    %v625 = vadd.f32 %v512, %v624
    %626 = vmatmul.f32.gmra.mxu0 %v53
    %v627 = vpop.f32.mrf.mxu0
    %v628 = vadd.f32 %v515, %v627
    %629 = vmatmul.f32.gmra.mxu0 %v60
    %v630 = vpop.f32.mrf.mxu0
    %v631 = vadd.f32 %v518, %v630
    %632 = vmatmul.f32.gmra.mxu0 %v67
    %v633 = vpop.f32.mrf.mxu0
    %v634 = vadd.f32 %v521, %v633
    %635 = vmatmul.f32.gmra.mxu0 %v74
    %v636 = vpop.f32.mrf.mxu0
    %v637 = vadd.f32 %v524, %v636
    %638 = vmatmul.f32.gmra.mxu0 %v81
    %v639 = vpop.f32.mrf.mxu0
    %v640 = vadd.f32 %v527, %v639
    %641 = vmatmul.f32.gmra.mxu0 %v88
    %v642 = vpop.f32.mrf.mxu0
    %v643 = vadd.f32 %v530, %v642
    %644 = vmatmul.f32.gmra.mxu0 %v95
    %v645 = vpop.f32.mrf.mxu0
    %v646 = vadd.f32 %v533, %v645
    %647 = vmatmul.f32.gmra.mxu0 %v102
    %v648 = vpop.f32.mrf.mxu0
    %v649 = vadd.f32 %v536, %v648
    %650 = vmatmul.f32.gmra.mxu0 %v109
    %v651 = vpop.f32.mrf.mxu0
    %v652 = vadd.f32 %v539, %v651
    %653 = vmatmul.f32.gmra.mxu0 %v116
    %v654 = vpop.f32.mrf.mxu0
    %v655 = vadd.f32 %v542, %v654
    %656 = vmatmul.f32.gmra.mxu0 %v123
    %v657 = vpop.f32.mrf.mxu0
    %v658 = vadd.f32 %v545, %v657
    %659 = vmatmul.f32.gmra.mxu0 %v130
    %v660 = vpop.f32.mrf.mxu0
    %v661 = vadd.f32 %v548, %v660
    %662 = vmatmul.f32.gmra.mxu0 %v137
    %v663 = vpop.f32.mrf.mxu0
    %v664 = vadd.f32 %v551, %v663
    %665 = vmatmul.f32.gmra.mxu0 %v144
    %v666 = vpop.f32.mrf.mxu0
    %v667 = vadd.f32 %v554, %v666
    %668 = vmatmul.f32.gmra.mxu0 %v151
    %v669 = vpop.f32.mrf.mxu0
    %v670 = vadd.f32 %v557, %v669
    %671 = vmatmul.f32.gmra.mxu0 %v158
    %v672 = vpop.f32.mrf.mxu0
    %v673 = vadd.f32 %v560, %v672
    %674 = vmatmul.f32.gmra.mxu0 %v165
    %v675 = vpop.f32.mrf.mxu0
    %v676 = vadd.f32 %v563, %v675
    %677 = vmatmul.f32.gmra.mxu0 %v172
    %v678 = vpop.f32.mrf.mxu0
    %v679 = vadd.f32 %v566, %v678
    %680 = vmatmul.f32.gmra.mxu0 %v179
    %v681 = vpop.f32.mrf.mxu0
    %v682 = vadd.f32 %v569, %v681
    %683 = vmatmul.f32.gmra.mxu0 %v186
    %v684 = vpop.f32.mrf.mxu0
    %v685 = vadd.f32 %v572, %v684
    %686 = vmatmul.f32.gmra.mxu0 %v193
    %v687 = vpop.f32.mrf.mxu0
    %v688 = vadd.f32 %v575, %v687
    %689 = vmatmul.f32.gmra.mxu0 %v200
    %v690 = vpop.f32.mrf.mxu0
    %v691 = vadd.f32 %v578, %v690
    %692 = vmatmul.f32.gmra.mxu0 %v207
    %v693 = vpop.f32.mrf.mxu0
    %v694 = vadd.f32 %v581, %v693
    %695 = vmatmul.f32.gmra.mxu0 %v214
    %v696 = vpop.f32.mrf.mxu0
    %v697 = vadd.f32 %v584, %v696
    %698 = vmatmul.f32.gmra.mxu0 %v221
    %v699 = vpop.f32.mrf.mxu0
    %v700 = vadd.f32 %v587, %v699
    %701 = vmatmul.f32.gmra.mxu0 %v228
    %v702 = vpop.f32.mrf.mxu0
    %v703 = vadd.f32 %v590, %v702
    %704 = vmatmul.f32.gmra.mxu0 %v235
    %v705 = vpop.f32.mrf.mxu0
    %v706 = vadd.f32 %v593, %v705
    %707 = vmatmul.f32.gmra.mxu0 %v242
    %v708 = vpop.f32.mrf.mxu0
    %v709 = vadd.f32 %v596, %v708
    %710 = vmatmul.f32.gmra.mxu0 %v249
    %v711 = vpop.f32.mrf.mxu0
    %v712 = vadd.f32 %v599, %v711
    %713 = vmatmul.f32.gmra.mxu0 %v256
    %v714 = vpop.f32.mrf.mxu0
    %v715 = vadd.f32 %v602, %v714
    %716 = vmatmul.f32.gmra.mxu0 %v263
    %v717 = vpop.f32.mrf.mxu0
    %v718 = vadd.f32 %v605, %v717
    %719 = vdwg.mxu0
    %720 = vmatpush.msra.mxu0 %v331
    %721 = vmatpush.msra.mxu0 %v330
    %722 = vmatpush.msra.mxu0 %v329
    %723 = vmatpush.msra.mxu0 %v328
    %724 = vmatpush.msra.mxu0 %v327
    %725 = vmatpush.msra.mxu0 %v326
    %726 = vmatpush.msra.mxu0 %v325
    %727 = vmatpush.msra.mxu0 %v324
    %728 = vmatpush.msra.mxu0 %v323
    %729 = vmatpush.msra.mxu0 %v322
    %730 = vmatpush.msra.mxu0 %v321
    %731 = vmatpush.msra.mxu0 %v320
    %732 = vmatpush.msra.mxu0 %v319
    %733 = vmatpush.msra.mxu0 %v318
    %734 = vmatpush.msra.mxu0 %v317
    %735 = vmatpush.msra.mxu0 %v316
    %736 = vmatmul.f32.gmra.mxu0 %v47
    %v737 = vpop.f32.mrf.mxu0
    %v738 = vadd.f32 %v625, %v737
    %739 = vmatmul.f32.gmra.mxu0 %v54
    %v740 = vpop.f32.mrf.mxu0
    %v741 = vadd.f32 %v628, %v740
    %742 = vmatmul.f32.gmra.mxu0 %v61
    %v743 = vpop.f32.mrf.mxu0
    %v744 = vadd.f32 %v631, %v743
    %745 = vmatmul.f32.gmra.mxu0 %v68
    %v746 = vpop.f32.mrf.mxu0
    %v747 = vadd.f32 %v634, %v746
    %748 = vmatmul.f32.gmra.mxu0 %v75
    %v749 = vpop.f32.mrf.mxu0
    %v750 = vadd.f32 %v637, %v749
    %751 = vmatmul.f32.gmra.mxu0 %v82
    %v752 = vpop.f32.mrf.mxu0
    %v753 = vadd.f32 %v640, %v752
    %754 = vmatmul.f32.gmra.mxu0 %v89
    %v755 = vpop.f32.mrf.mxu0
    %v756 = vadd.f32 %v643, %v755
    %757 = vmatmul.f32.gmra.mxu0 %v96
    %v758 = vpop.f32.mrf.mxu0
    %v759 = vadd.f32 %v646, %v758
    %760 = vmatmul.f32.gmra.mxu0 %v103
    %v761 = vpop.f32.mrf.mxu0
    %v762 = vadd.f32 %v649, %v761
    %763 = vmatmul.f32.gmra.mxu0 %v110
    %v764 = vpop.f32.mrf.mxu0
    %v765 = vadd.f32 %v652, %v764
    %766 = vmatmul.f32.gmra.mxu0 %v117
    %v767 = vpop.f32.mrf.mxu0
    %v768 = vadd.f32 %v655, %v767
    %769 = vmatmul.f32.gmra.mxu0 %v124
    %v770 = vpop.f32.mrf.mxu0
    %v771 = vadd.f32 %v658, %v770
    %772 = vmatmul.f32.gmra.mxu0 %v131
    %v773 = vpop.f32.mrf.mxu0
    %v774 = vadd.f32 %v661, %v773
    %775 = vmatmul.f32.gmra.mxu0 %v138
    %v776 = vpop.f32.mrf.mxu0
    %v777 = vadd.f32 %v664, %v776
    %778 = vmatmul.f32.gmra.mxu0 %v145
    %v779 = vpop.f32.mrf.mxu0
    %v780 = vadd.f32 %v667, %v779
    %781 = vmatmul.f32.gmra.mxu0 %v152
    %v782 = vpop.f32.mrf.mxu0
    %v783 = vadd.f32 %v670, %v782
    %784 = vmatmul.f32.gmra.mxu0 %v159
    %v785 = vpop.f32.mrf.mxu0
    %v786 = vadd.f32 %v673, %v785
    %787 = vmatmul.f32.gmra.mxu0 %v166
    %v788 = vpop.f32.mrf.mxu0
    %v789 = vadd.f32 %v676, %v788
    %790 = vmatmul.f32.gmra.mxu0 %v173
    %v791 = vpop.f32.mrf.mxu0
    %v792 = vadd.f32 %v679, %v791
    %793 = vmatmul.f32.gmra.mxu0 %v180
    %v794 = vpop.f32.mrf.mxu0
    %v795 = vadd.f32 %v682, %v794
    %796 = vmatmul.f32.gmra.mxu0 %v187
    %v797 = vpop.f32.mrf.mxu0
    %v798 = vadd.f32 %v685, %v797
    %799 = vmatmul.f32.gmra.mxu0 %v194
    %v800 = vpop.f32.mrf.mxu0
    %v801 = vadd.f32 %v688, %v800
    %802 = vmatmul.f32.gmra.mxu0 %v201
    %v803 = vpop.f32.mrf.mxu0
    %v804 = vadd.f32 %v691, %v803
    %805 = vmatmul.f32.gmra.mxu0 %v208
    %v806 = vpop.f32.mrf.mxu0
    %v807 = vadd.f32 %v694, %v806
    %808 = vmatmul.f32.gmra.mxu0 %v215
    %v809 = vpop.f32.mrf.mxu0
    %v810 = vadd.f32 %v697, %v809
    %811 = vmatmul.f32.gmra.mxu0 %v222
    %v812 = vpop.f32.mrf.mxu0
    %v813 = vadd.f32 %v700, %v812
    %814 = vmatmul.f32.gmra.mxu0 %v229
    %v815 = vpop.f32.mrf.mxu0
    %v816 = vadd.f32 %v703, %v815
    %817 = vmatmul.f32.gmra.mxu0 %v236
    %v818 = vpop.f32.mrf.mxu0
    %v819 = vadd.f32 %v706, %v818
    %820 = vmatmul.f32.gmra.mxu0 %v243
    %v821 = vpop.f32.mrf.mxu0
    %v822 = vadd.f32 %v709, %v821
    %823 = vmatmul.f32.gmra.mxu0 %v250
    %v824 = vpop.f32.mrf.mxu0
    %v825 = vadd.f32 %v712, %v824
    %826 = vmatmul.f32.gmra.mxu0 %v257
    %v827 = vpop.f32.mrf.mxu0
    %v828 = vadd.f32 %v715, %v827
    %829 = vmatmul.f32.gmra.mxu0 %v264
    %v830 = vpop.f32.mrf.mxu0
    %v831 = vadd.f32 %v718, %v830
    %832 = vdwg.mxu0
    %833 = vmatpush.msra.mxu0 %v347
    %834 = vmatpush.msra.mxu0 %v346
    %835 = vmatpush.msra.mxu0 %v345
    %836 = vmatpush.msra.mxu0 %v344
    %837 = vmatpush.msra.mxu0 %v343
    %838 = vmatpush.msra.mxu0 %v342
    %839 = vmatpush.msra.mxu0 %v341
    %840 = vmatpush.msra.mxu0 %v340
    %841 = vmatpush.msra.mxu0 %v339
    %842 = vmatpush.msra.mxu0 %v338
    %843 = vmatpush.msra.mxu0 %v337
    %844 = vmatpush.msra.mxu0 %v336
    %845 = vmatpush.msra.mxu0 %v335
    %846 = vmatpush.msra.mxu0 %v334
    %847 = vmatpush.msra.mxu0 %v333
    %848 = vmatpush.msra.mxu0 %v332
    %849 = vmatmul.f32.gmra.mxu0 %v48
    %v850 = vpop.f32.mrf.mxu0
    %v851 = vadd.f32 %v738, %v850
    %852 = vmatmul.f32.gmra.mxu0 %v55
    %v853 = vpop.f32.mrf.mxu0
    %v854 = vadd.f32 %v741, %v853
    %855 = vmatmul.f32.gmra.mxu0 %v62
    %v856 = vpop.f32.mrf.mxu0
    %v857 = vadd.f32 %v744, %v856
    %858 = vmatmul.f32.gmra.mxu0 %v69
    %v859 = vpop.f32.mrf.mxu0
    %v860 = vadd.f32 %v747, %v859
    %861 = vmatmul.f32.gmra.mxu0 %v76
    %v862 = vpop.f32.mrf.mxu0
    %v863 = vadd.f32 %v750, %v862
    %864 = vmatmul.f32.gmra.mxu0 %v83
    %v865 = vpop.f32.mrf.mxu0
    %v866 = vadd.f32 %v753, %v865
    %867 = vmatmul.f32.gmra.mxu0 %v90
    %v868 = vpop.f32.mrf.mxu0
    %v869 = vadd.f32 %v756, %v868
    %870 = vmatmul.f32.gmra.mxu0 %v97
    %v871 = vpop.f32.mrf.mxu0
    %v872 = vadd.f32 %v759, %v871
    %873 = vmatmul.f32.gmra.mxu0 %v104
    %v874 = vpop.f32.mrf.mxu0
    %v875 = vadd.f32 %v762, %v874
    %876 = vmatmul.f32.gmra.mxu0 %v111
    %v877 = vpop.f32.mrf.mxu0
    %v878 = vadd.f32 %v765, %v877
    %879 = vmatmul.f32.gmra.mxu0 %v118
    %v880 = vpop.f32.mrf.mxu0
    %v881 = vadd.f32 %v768, %v880
    %882 = vmatmul.f32.gmra.mxu0 %v125
    %v883 = vpop.f32.mrf.mxu0
    %v884 = vadd.f32 %v771, %v883
    %885 = vmatmul.f32.gmra.mxu0 %v132
    %v886 = vpop.f32.mrf.mxu0
    %v887 = vadd.f32 %v774, %v886
    %888 = vmatmul.f32.gmra.mxu0 %v139
    %v889 = vpop.f32.mrf.mxu0
    %v890 = vadd.f32 %v777, %v889
    %891 = vmatmul.f32.gmra.mxu0 %v146
    %v892 = vpop.f32.mrf.mxu0
    %v893 = vadd.f32 %v780, %v892
    %894 = vmatmul.f32.gmra.mxu0 %v153
    %v895 = vpop.f32.mrf.mxu0
    %v896 = vadd.f32 %v783, %v895
    %897 = vmatmul.f32.gmra.mxu0 %v160
    %v898 = vpop.f32.mrf.mxu0
    %v899 = vadd.f32 %v786, %v898
    %900 = vmatmul.f32.gmra.mxu0 %v167
    %v901 = vpop.f32.mrf.mxu0
    %v902 = vadd.f32 %v789, %v901
    %903 = vmatmul.f32.gmra.mxu0 %v174
    %v904 = vpop.f32.mrf.mxu0
    %v905 = vadd.f32 %v792, %v904
    %906 = vmatmul.f32.gmra.mxu0 %v181
    %v907 = vpop.f32.mrf.mxu0
    %v908 = vadd.f32 %v795, %v907
    %909 = vmatmul.f32.gmra.mxu0 %v188
    %v910 = vpop.f32.mrf.mxu0
    %v911 = vadd.f32 %v798, %v910
    %912 = vmatmul.f32.gmra.mxu0 %v195
    %v913 = vpop.f32.mrf.mxu0
    %v914 = vadd.f32 %v801, %v913
    %915 = vmatmul.f32.gmra.mxu0 %v202
    %v916 = vpop.f32.mrf.mxu0
    %v917 = vadd.f32 %v804, %v916
    %918 = vmatmul.f32.gmra.mxu0 %v209
    %v919 = vpop.f32.mrf.mxu0
    %v920 = vadd.f32 %v807, %v919
    %921 = vmatmul.f32.gmra.mxu0 %v216
    %v922 = vpop.f32.mrf.mxu0
    %v923 = vadd.f32 %v810, %v922
    %924 = vmatmul.f32.gmra.mxu0 %v223
    %v925 = vpop.f32.mrf.mxu0
    %v926 = vadd.f32 %v813, %v925
    %927 = vmatmul.f32.gmra.mxu0 %v230
    %v928 = vpop.f32.mrf.mxu0
    %v929 = vadd.f32 %v816, %v928
    %930 = vmatmul.f32.gmra.mxu0 %v237
    %v931 = vpop.f32.mrf.mxu0
    %v932 = vadd.f32 %v819, %v931
    %933 = vmatmul.f32.gmra.mxu0 %v244
    %v934 = vpop.f32.mrf.mxu0
    %v935 = vadd.f32 %v822, %v934
    %936 = vmatmul.f32.gmra.mxu0 %v251
    %v937 = vpop.f32.mrf.mxu0
    %v938 = vadd.f32 %v825, %v937
    %939 = vmatmul.f32.gmra.mxu0 %v258
    %v940 = vpop.f32.mrf.mxu0
    %v941 = vadd.f32 %v828, %v940
    %942 = vmatmul.f32.gmra.mxu0 %v265
    %v943 = vpop.f32.mrf.mxu0
    %v944 = vadd.f32 %v831, %v943
    %945 = vdwg.mxu0
    %946 = vmatpush.msra.mxu0 %v363
    %947 = vmatpush.msra.mxu0 %v362
    %948 = vmatpush.msra.mxu0 %v361
    %949 = vmatpush.msra.mxu0 %v360
    %950 = vmatpush.msra.mxu0 %v359
    %951 = vmatpush.msra.mxu0 %v358
    %952 = vmatpush.msra.mxu0 %v357
    %953 = vmatpush.msra.mxu0 %v356
    %954 = vmatpush.msra.mxu0 %v355
    %955 = vmatpush.msra.mxu0 %v354
    %956 = vmatpush.msra.mxu0 %v353
    %957 = vmatpush.msra.mxu0 %v352
    %958 = vmatpush.msra.mxu0 %v351
    %959 = vmatpush.msra.mxu0 %v350
    %960 = vmatpush.msra.mxu0 %v349
    %961 = vmatpush.msra.mxu0 %v348
    %962 = vmatmul.f32.gmra.mxu0 %v49
    %v963 = vpop.f32.mrf.mxu0
    %v964 = vadd.f32 %v851, %v963
    %965 = vmatmul.f32.gmra.mxu0 %v56
    %v966 = vpop.f32.mrf.mxu0
    %v967 = vadd.f32 %v854, %v966
    %968 = vmatmul.f32.gmra.mxu0 %v63
    %v969 = vpop.f32.mrf.mxu0
    %v970 = vadd.f32 %v857, %v969
    %971 = vmatmul.f32.gmra.mxu0 %v70
    %v972 = vpop.f32.mrf.mxu0
    %v973 = vadd.f32 %v860, %v972
    %974 = vmatmul.f32.gmra.mxu0 %v77
    %v975 = vpop.f32.mrf.mxu0
    %v976 = vadd.f32 %v863, %v975
    %977 = vmatmul.f32.gmra.mxu0 %v84
    %v978 = vpop.f32.mrf.mxu0
    %v979 = vadd.f32 %v866, %v978
    %980 = vmatmul.f32.gmra.mxu0 %v91
    %v981 = vpop.f32.mrf.mxu0
    %v982 = vadd.f32 %v869, %v981
    %983 = vmatmul.f32.gmra.mxu0 %v98
    %v984 = vpop.f32.mrf.mxu0
    %v985 = vadd.f32 %v872, %v984
    %986 = vmatmul.f32.gmra.mxu0 %v105
    %v987 = vpop.f32.mrf.mxu0
    %v988 = vadd.f32 %v875, %v987
    %989 = vmatmul.f32.gmra.mxu0 %v112
    %v990 = vpop.f32.mrf.mxu0
    %v991 = vadd.f32 %v878, %v990
    %992 = vmatmul.f32.gmra.mxu0 %v119
    %v993 = vpop.f32.mrf.mxu0
    %v994 = vadd.f32 %v881, %v993
    %995 = vmatmul.f32.gmra.mxu0 %v126
    %v996 = vpop.f32.mrf.mxu0
    %v997 = vadd.f32 %v884, %v996
    %998 = vmatmul.f32.gmra.mxu0 %v133
    %v999 = vpop.f32.mrf.mxu0
    %v1000 = vadd.f32 %v887, %v999
    %1001 = vmatmul.f32.gmra.mxu0 %v140
    %v1002 = vpop.f32.mrf.mxu0
    %v1003 = vadd.f32 %v890, %v1002
    %1004 = vmatmul.f32.gmra.mxu0 %v147
    %v1005 = vpop.f32.mrf.mxu0
    %v1006 = vadd.f32 %v893, %v1005
    %1007 = vmatmul.f32.gmra.mxu0 %v154
    %v1008 = vpop.f32.mrf.mxu0
    %v1009 = vadd.f32 %v896, %v1008
    %1010 = vmatmul.f32.gmra.mxu0 %v161
    %v1011 = vpop.f32.mrf.mxu0
    %v1012 = vadd.f32 %v899, %v1011
    %1013 = vmatmul.f32.gmra.mxu0 %v168
    %v1014 = vpop.f32.mrf.mxu0
    %v1015 = vadd.f32 %v902, %v1014
    %1016 = vmatmul.f32.gmra.mxu0 %v175
    %v1017 = vpop.f32.mrf.mxu0
    %v1018 = vadd.f32 %v905, %v1017
    %1019 = vmatmul.f32.gmra.mxu0 %v182
    %v1020 = vpop.f32.mrf.mxu0
    %v1021 = vadd.f32 %v908, %v1020
    %1022 = vmatmul.f32.gmra.mxu0 %v189
    %v1023 = vpop.f32.mrf.mxu0
    %v1024 = vadd.f32 %v911, %v1023
    %1025 = vmatmul.f32.gmra.mxu0 %v196
    %v1026 = vpop.f32.mrf.mxu0
    %v1027 = vadd.f32 %v914, %v1026
    %1028 = vmatmul.f32.gmra.mxu0 %v203
    %v1029 = vpop.f32.mrf.mxu0
    %v1030 = vadd.f32 %v917, %v1029
    %1031 = vmatmul.f32.gmra.mxu0 %v210
    %v1032 = vpop.f32.mrf.mxu0
    %v1033 = vadd.f32 %v920, %v1032
    %1034 = vmatmul.f32.gmra.mxu0 %v217
    %v1035 = vpop.f32.mrf.mxu0
    %v1036 = vadd.f32 %v923, %v1035
    %1037 = vmatmul.f32.gmra.mxu0 %v224
    %v1038 = vpop.f32.mrf.mxu0
    %v1039 = vadd.f32 %v926, %v1038
    %1040 = vmatmul.f32.gmra.mxu0 %v231
    %v1041 = vpop.f32.mrf.mxu0
    %v1042 = vadd.f32 %v929, %v1041
    %1043 = vmatmul.f32.gmra.mxu0 %v238
    %v1044 = vpop.f32.mrf.mxu0
    %v1045 = vadd.f32 %v932, %v1044
    %1046 = vmatmul.f32.gmra.mxu0 %v245
    %v1047 = vpop.f32.mrf.mxu0
    %v1048 = vadd.f32 %v935, %v1047
    %1049 = vmatmul.f32.gmra.mxu0 %v252
    %v1050 = vpop.f32.mrf.mxu0
    %v1051 = vadd.f32 %v938, %v1050
    %1052 = vmatmul.f32.gmra.mxu0 %v259
    %v1053 = vpop.f32.mrf.mxu0
    %v1054 = vadd.f32 %v941, %v1053
    %1055 = vmatmul.f32.gmra.mxu0 %v266
    %v1056 = vpop.f32.mrf.mxu0
    %v1057 = vadd.f32 %v944, %v1056
    %1058 = vdwg.mxu0
    %1059 = vmatpush.msra.mxu0 %v379
    %1060 = vmatpush.msra.mxu0 %v378
    %1061 = vmatpush.msra.mxu0 %v377
    %1062 = vmatpush.msra.mxu0 %v376
    %1063 = vmatpush.msra.mxu0 %v375
    %1064 = vmatpush.msra.mxu0 %v374
    %1065 = vmatpush.msra.mxu0 %v373
    %1066 = vmatpush.msra.mxu0 %v372
    %1067 = vmatpush.msra.mxu0 %v371
    %1068 = vmatpush.msra.mxu0 %v370
    %1069 = vmatpush.msra.mxu0 %v369
    %1070 = vmatpush.msra.mxu0 %v368
    %1071 = vmatpush.msra.mxu0 %v367
    %1072 = vmatpush.msra.mxu0 %v366
    %1073 = vmatpush.msra.mxu0 %v365
    %1074 = vmatpush.msra.mxu0 %v364
    %1075 = vmatmul.f32.gmra.mxu0 %v50
    %v1076 = vpop.f32.mrf.mxu0
    %v1077 = vadd.f32 %v964, %v1076
    %1078 = vmatmul.f32.gmra.mxu0 %v57
    %v1079 = vpop.f32.mrf.mxu0
    %v1080 = vadd.f32 %v967, %v1079
    %1081 = vmatmul.f32.gmra.mxu0 %v64
    %v1082 = vpop.f32.mrf.mxu0
    %v1083 = vadd.f32 %v970, %v1082
    %1084 = vmatmul.f32.gmra.mxu0 %v71
    %v1085 = vpop.f32.mrf.mxu0
    %v1086 = vadd.f32 %v973, %v1085
    %1087 = vmatmul.f32.gmra.mxu0 %v78
    %v1088 = vpop.f32.mrf.mxu0
    %v1089 = vadd.f32 %v976, %v1088
    %1090 = vmatmul.f32.gmra.mxu0 %v85
    %v1091 = vpop.f32.mrf.mxu0
    %v1092 = vadd.f32 %v979, %v1091
    %1093 = vmatmul.f32.gmra.mxu0 %v92
    %v1094 = vpop.f32.mrf.mxu0
    %v1095 = vadd.f32 %v982, %v1094
    %1096 = vmatmul.f32.gmra.mxu0 %v99
    %v1097 = vpop.f32.mrf.mxu0
    %v1098 = vadd.f32 %v985, %v1097
    %1099 = vmatmul.f32.gmra.mxu0 %v106
    %v1100 = vpop.f32.mrf.mxu0
    %v1101 = vadd.f32 %v988, %v1100
    %1102 = vmatmul.f32.gmra.mxu0 %v113
    %v1103 = vpop.f32.mrf.mxu0
    %v1104 = vadd.f32 %v991, %v1103
    %1105 = vmatmul.f32.gmra.mxu0 %v120
    %v1106 = vpop.f32.mrf.mxu0
    %v1107 = vadd.f32 %v994, %v1106
    %1108 = vmatmul.f32.gmra.mxu0 %v127
    %v1109 = vpop.f32.mrf.mxu0
    %v1110 = vadd.f32 %v997, %v1109
    %1111 = vmatmul.f32.gmra.mxu0 %v134
    %v1112 = vpop.f32.mrf.mxu0
    %v1113 = vadd.f32 %v1000, %v1112
    %1114 = vmatmul.f32.gmra.mxu0 %v141
    %v1115 = vpop.f32.mrf.mxu0
    %v1116 = vadd.f32 %v1003, %v1115
    %1117 = vmatmul.f32.gmra.mxu0 %v148
    %v1118 = vpop.f32.mrf.mxu0
    %v1119 = vadd.f32 %v1006, %v1118
    %1120 = vmatmul.f32.gmra.mxu0 %v155
    %v1121 = vpop.f32.mrf.mxu0
    %v1122 = vadd.f32 %v1009, %v1121
    %1123 = vmatmul.f32.gmra.mxu0 %v162
    %v1124 = vpop.f32.mrf.mxu0
    %v1125 = vadd.f32 %v1012, %v1124
    %1126 = vmatmul.f32.gmra.mxu0 %v169
    %v1127 = vpop.f32.mrf.mxu0
    %v1128 = vadd.f32 %v1015, %v1127
    %1129 = vmatmul.f32.gmra.mxu0 %v176
    %v1130 = vpop.f32.mrf.mxu0
    %v1131 = vadd.f32 %v1018, %v1130
    %1132 = vmatmul.f32.gmra.mxu0 %v183
    %v1133 = vpop.f32.mrf.mxu0
    %v1134 = vadd.f32 %v1021, %v1133
    %1135 = vmatmul.f32.gmra.mxu0 %v190
    %v1136 = vpop.f32.mrf.mxu0
    %v1137 = vadd.f32 %v1024, %v1136
    %1138 = vmatmul.f32.gmra.mxu0 %v197
    %v1139 = vpop.f32.mrf.mxu0
    %v1140 = vadd.f32 %v1027, %v1139
    %1141 = vmatmul.f32.gmra.mxu0 %v204
    %v1142 = vpop.f32.mrf.mxu0
    %v1143 = vadd.f32 %v1030, %v1142
    %1144 = vmatmul.f32.gmra.mxu0 %v211
    %v1145 = vpop.f32.mrf.mxu0
    %v1146 = vadd.f32 %v1033, %v1145
    %1147 = vmatmul.f32.gmra.mxu0 %v218
    %v1148 = vpop.f32.mrf.mxu0
    %v1149 = vadd.f32 %v1036, %v1148
    %1150 = vmatmul.f32.gmra.mxu0 %v225
    %v1151 = vpop.f32.mrf.mxu0
    %v1152 = vadd.f32 %v1039, %v1151
    %1153 = vmatmul.f32.gmra.mxu0 %v232
    %v1154 = vpop.f32.mrf.mxu0
    %v1155 = vadd.f32 %v1042, %v1154
    %1156 = vmatmul.f32.gmra.mxu0 %v239
    %v1157 = vpop.f32.mrf.mxu0
    %v1158 = vadd.f32 %v1045, %v1157
    %1159 = vmatmul.f32.gmra.mxu0 %v246
    %v1160 = vpop.f32.mrf.mxu0
    %v1161 = vadd.f32 %v1048, %v1160
    %1162 = vmatmul.f32.gmra.mxu0 %v253
    %v1163 = vpop.f32.mrf.mxu0
    %v1164 = vadd.f32 %v1051, %v1163
    %1165 = vmatmul.f32.gmra.mxu0 %v260
    %v1166 = vpop.f32.mrf.mxu0
    %v1167 = vadd.f32 %v1054, %v1166
    %1168 = vmatmul.f32.gmra.mxu0 %v267
    %v1169 = vpop.f32.mrf.mxu0
    %v1170 = vadd.f32 %v1057, %v1169
    %1171 = vdwg.mxu0
    %v1172 = vmax.f32 %v1077, 0.0
    %v1173 = vmax.f32 %v1080, 0.0
    %v1174 = vmax.f32 %v1083, 0.0
    %v1175 = vmax.f32 %v1086, 0.0
    %v1176 = vmax.f32 %v1089, 0.0
    %v1177 = vmax.f32 %v1092, 0.0
    %v1178 = vmax.f32 %v1095, 0.0
    %v1179 = vmax.f32 %v1098, 0.0
    %v1180 = vmax.f32 %v1101, 0.0
    %v1181 = vmax.f32 %v1104, 0.0
    %v1182 = vmax.f32 %v1107, 0.0
    %v1183 = vmax.f32 %v1110, 0.0
    %v1184 = vmax.f32 %v1113, 0.0
    %v1185 = vmax.f32 %v1116, 0.0
    %v1186 = vmax.f32 %v1119, 0.0
    %v1187 = vmax.f32 %v1122, 0.0
    %v1188 = vmax.f32 %v1125, 0.0
    %v1189 = vmax.f32 %v1128, 0.0
    %v1190 = vmax.f32 %v1131, 0.0
    %v1191 = vmax.f32 %v1134, 0.0
    %v1192 = vmax.f32 %v1137, 0.0
    %v1193 = vmax.f32 %v1140, 0.0
    %v1194 = vmax.f32 %v1143, 0.0
    %v1195 = vmax.f32 %v1146, 0.0
    %v1196 = vmax.f32 %v1149, 0.0
    %v1197 = vmax.f32 %v1152, 0.0
    %v1198 = vmax.f32 %v1155, 0.0
    %v1199 = vmax.f32 %v1158, 0.0
    %v1200 = vmax.f32 %v1161, 0.0
    %v1201 = vmax.f32 %v1164, 0.0
    %v1202 = vmax.f32 %v1167, 0.0
    %v1203 = vmax.f32 %v1170, 0.0
    %v1204 = vld [vmem:[%s2] sm:$0xff]
    %v1205 = vld [vmem:[%s2 + $0x8] sm:$0xff]
    %v1206 = vld [vmem:[%s2 + $0x10] sm:$0xff]
    %v1207 = vld [vmem:[%s2 + $0x18] sm:$0xff]
    %v1208 = vld [vmem:[%s2 + $0x20] sm:$0xff]
    %v1209 = vld [vmem:[%s2 + $0x28] sm:$0xff]
    %v1210 = vld [vmem:[%s2 + $0x30] sm:$0xff]
    %v1211 = vld [vmem:[%s2 + $0x38] sm:$0xff]
    %v1212 = vperm.slane %v41, 0
    %vm1213 = vcmask 523264
    %v1215 = vsel %vm1213, %v1172, 0
    %v1218 = vsel %vm1213, %v1173, 0
    %v1221 = vsel %vm1213, %v1174, 0
    %v1224 = vsel %vm1213, %v1175, 0
    %v1227 = vsel %vm1213, %v1176, 0
    %v1230 = vsel %vm1213, %v1177, 0
    %v1233 = vsel %vm1213, %v1178, 0
    %v1236 = vsel %vm1213, %v1179, 0
    %v1239 = vsel %vm1213, %v1180, 0
    %v1242 = vsel %vm1213, %v1181, 0
    %v1245 = vsel %vm1213, %v1182, 0
    %v1248 = vsel %vm1213, %v1183, 0
    %v1251 = vsel %vm1213, %v1184, 0
    %v1254 = vsel %vm1213, %v1185, 0
    %v1257 = vsel %vm1213, %v1186, 0
    %v1260 = vsel %vm1213, %v1187, 0
    %v1263 = vsel %vm1213, %v1188, 0
    %v1266 = vsel %vm1213, %v1189, 0
    %v1269 = vsel %vm1213, %v1190, 0
    %v1272 = vsel %vm1213, %v1191, 0
    %v1275 = vsel %vm1213, %v1192, 0
    %v1278 = vsel %vm1213, %v1193, 0
    %v1281 = vsel %vm1213, %v1194, 0
    %v1284 = vsel %vm1213, %v1195, 0
    %v1287 = vsel %vm1213, %v1196, 0
    %v1290 = vsel %vm1213, %v1197, 0
    %v1293 = vsel %vm1213, %v1198, 0
    %v1296 = vsel %vm1213, %v1199, 0
    %v1299 = vsel %vm1213, %v1200, 0
    %v1302 = vsel %vm1213, %v1201, 0
    %v1305 = vsel %vm1213, %v1202, 0
    %v1308 = vsel %vm1213, %v1203, 0
    %1310 = vmatpush.msra.mxu0 0.0
    %1311 = vmatpush.msra.mxu0 0.0
    %1312 = vmatpush.msra.mxu0 0.0
    %1313 = vmatpush.msra.mxu0 0.0
    %1314 = vmatpush.msra.mxu0 0.0
    %1315 = vmatpush.msra.mxu0 0.0
    %1316 = vmatpush.msra.mxu0 0.0
    %1317 = vmatpush.msra.mxu0 0.0
    %1318 = vmatpush.msra.mxu0 %v1211
    %1319 = vmatpush.msra.mxu0 %v1210
    %1320 = vmatpush.msra.mxu0 %v1209
    %1321 = vmatpush.msra.mxu0 %v1208
    %1322 = vmatpush.msra.mxu0 %v1207
    %1323 = vmatpush.msra.mxu0 %v1206
    %1324 = vmatpush.msra.mxu0 %v1205
    %1325 = vmatpush.msra.mxu0 %v1204
    %1326 = vmatmul.f32.gmra.mxu0 %v1215
    %v1327 = vpop.f32.mrf.mxu0
    %v1328 = vadd.f32 %v1212, %v1327
    %1329 = vmatmul.f32.gmra.mxu0 %v1218
    %v1330 = vpop.f32.mrf.mxu0
    %v1331 = vadd.f32 %v1212, %v1330
    %1332 = vmatmul.f32.gmra.mxu0 %v1221
    %v1333 = vpop.f32.mrf.mxu0
    %v1334 = vadd.f32 %v1212, %v1333
    %1335 = vmatmul.f32.gmra.mxu0 %v1224
    %v1336 = vpop.f32.mrf.mxu0
    %v1337 = vadd.f32 %v1212, %v1336
    %1338 = vmatmul.f32.gmra.mxu0 %v1227
    %v1339 = vpop.f32.mrf.mxu0
    %v1340 = vadd.f32 %v1212, %v1339
    %1341 = vmatmul.f32.gmra.mxu0 %v1230
    %v1342 = vpop.f32.mrf.mxu0
    %v1343 = vadd.f32 %v1212, %v1342
    %1344 = vmatmul.f32.gmra.mxu0 %v1233
    %v1345 = vpop.f32.mrf.mxu0
    %v1346 = vadd.f32 %v1212, %v1345
    %1347 = vmatmul.f32.gmra.mxu0 %v1236
    %v1348 = vpop.f32.mrf.mxu0
    %v1349 = vadd.f32 %v1212, %v1348
    %1350 = vmatmul.f32.gmra.mxu0 %v1239
    %v1351 = vpop.f32.mrf.mxu0
    %v1352 = vadd.f32 %v1212, %v1351
    %1353 = vmatmul.f32.gmra.mxu0 %v1242
    %v1354 = vpop.f32.mrf.mxu0
    %v1355 = vadd.f32 %v1212, %v1354
    %1356 = vmatmul.f32.gmra.mxu0 %v1245
    %v1357 = vpop.f32.mrf.mxu0
    %v1358 = vadd.f32 %v1212, %v1357
    %1359 = vmatmul.f32.gmra.mxu0 %v1248
    %v1360 = vpop.f32.mrf.mxu0
    %v1361 = vadd.f32 %v1212, %v1360
    %1362 = vmatmul.f32.gmra.mxu0 %v1251
    %v1363 = vpop.f32.mrf.mxu0
    %v1364 = vadd.f32 %v1212, %v1363
    %1365 = vmatmul.f32.gmra.mxu0 %v1254
    %v1366 = vpop.f32.mrf.mxu0
    %v1367 = vadd.f32 %v1212, %v1366
    %1368 = vmatmul.f32.gmra.mxu0 %v1257
    %v1369 = vpop.f32.mrf.mxu0
    %v1370 = vadd.f32 %v1212, %v1369
    %1371 = vmatmul.f32.gmra.mxu0 %v1260
    %v1372 = vpop.f32.mrf.mxu0
    %v1373 = vadd.f32 %v1212, %v1372
    %1374 = vmatmul.f32.gmra.mxu0 %v1263
    %v1375 = vpop.f32.mrf.mxu0
    %v1376 = vadd.f32 %v1212, %v1375
    %1377 = vmatmul.f32.gmra.mxu0 %v1266
    %v1378 = vpop.f32.mrf.mxu0
    %v1379 = vadd.f32 %v1212, %v1378
    %1380 = vmatmul.f32.gmra.mxu0 %v1269
    %v1381 = vpop.f32.mrf.mxu0
    %v1382 = vadd.f32 %v1212, %v1381
    %1383 = vmatmul.f32.gmra.mxu0 %v1272
    %v1384 = vpop.f32.mrf.mxu0
    %v1385 = vadd.f32 %v1212, %v1384
    %1386 = vmatmul.f32.gmra.mxu0 %v1275
    %v1387 = vpop.f32.mrf.mxu0
    %v1388 = vadd.f32 %v1212, %v1387
    %1389 = vmatmul.f32.gmra.mxu0 %v1278
    %v1390 = vpop.f32.mrf.mxu0
    %v1391 = vadd.f32 %v1212, %v1390
    %1392 = vmatmul.f32.gmra.mxu0 %v1281
    %v1393 = vpop.f32.mrf.mxu0
    %v1394 = vadd.f32 %v1212, %v1393
    %1395 = vmatmul.f32.gmra.mxu0 %v1284
    %v1396 = vpop.f32.mrf.mxu0
    %v1397 = vadd.f32 %v1212, %v1396
    %1398 = vmatmul.f32.gmra.mxu0 %v1287
    %v1399 = vpop.f32.mrf.mxu0
    %v1400 = vadd.f32 %v1212, %v1399
    %1401 = vmatmul.f32.gmra.mxu0 %v1290
    %v1402 = vpop.f32.mrf.mxu0
    %v1403 = vadd.f32 %v1212, %v1402
    %1404 = vmatmul.f32.gmra.mxu0 %v1293
    %v1405 = vpop.f32.mrf.mxu0
    %v1406 = vadd.f32 %v1212, %v1405
    %1407 = vmatmul.f32.gmra.mxu0 %v1296
    %v1408 = vpop.f32.mrf.mxu0
    %v1409 = vadd.f32 %v1212, %v1408
    %1410 = vmatmul.f32.gmra.mxu0 %v1299
    %v1411 = vpop.f32.mrf.mxu0
    %v1412 = vadd.f32 %v1212, %v1411
    %1413 = vmatmul.f32.gmra.mxu0 %v1302
    %v1414 = vpop.f32.mrf.mxu0
    %v1415 = vadd.f32 %v1212, %v1414
    %1416 = vmatmul.f32.gmra.mxu0 %v1305
    %v1417 = vpop.f32.mrf.mxu0
    %v1418 = vadd.f32 %v1212, %v1417
    %1419 = vmatmul.f32.gmra.mxu0 %v1308
    %v1420 = vpop.f32.mrf.mxu0
    %v1421 = vadd.f32 %v1212, %v1420
    %1422 = vdwg.mxu0
    %v1423 = vmax.f32 %v1328, 0.0
    %v1424 = vmax.f32 %v1331, 0.0
    %v1425 = vmax.f32 %v1334, 0.0
    %v1426 = vmax.f32 %v1337, 0.0
    %v1427 = vmax.f32 %v1340, 0.0
    %v1428 = vmax.f32 %v1343, 0.0
    %v1429 = vmax.f32 %v1346, 0.0
    %v1430 = vmax.f32 %v1349, 0.0
    %v1431 = vmax.f32 %v1352, 0.0
    %v1432 = vmax.f32 %v1355, 0.0
    %v1433 = vmax.f32 %v1358, 0.0
    %v1434 = vmax.f32 %v1361, 0.0
    %v1435 = vmax.f32 %v1364, 0.0
    %v1436 = vmax.f32 %v1367, 0.0
    %v1437 = vmax.f32 %v1370, 0.0
    %v1438 = vmax.f32 %v1373, 0.0
    %v1439 = vmax.f32 %v1376, 0.0
    %v1440 = vmax.f32 %v1379, 0.0
    %v1441 = vmax.f32 %v1382, 0.0
    %v1442 = vmax.f32 %v1385, 0.0
    %v1443 = vmax.f32 %v1388, 0.0
    %v1444 = vmax.f32 %v1391, 0.0
    %v1445 = vmax.f32 %v1394, 0.0
    %v1446 = vmax.f32 %v1397, 0.0
    %v1447 = vmax.f32 %v1400, 0.0
    %v1448 = vmax.f32 %v1403, 0.0
    %v1449 = vmax.f32 %v1406, 0.0
    %v1450 = vmax.f32 %v1409, 0.0
    %v1451 = vmax.f32 %v1412, 0.0
    %v1452 = vmax.f32 %v1415, 0.0
    %v1453 = vmax.f32 %v1418, 0.0
    %v1454 = vmax.f32 %v1421, 0.0
    %v1455 = vld [vmem:[%s3] sm:$0xff]
    %v1456 = vld [vmem:[%s3 + $0x8] sm:$0xff]
    %v1457 = vld [vmem:[%s3 + $0x10] sm:$0xff]
    %v1458 = vld [vmem:[%s3 + $0x18] sm:$0xff]
    %v1459 = vld [vmem:[%s3 + $0x20] sm:$0xff]
    %v1460 = vld [vmem:[%s3 + $0x28] sm:$0xff]
    %v1461 = vld [vmem:[%s3 + $0x30] sm:$0xff]
    %v1462 = vld [vmem:[%s3 + $0x38] sm:$0xff]
    %v1463 = vperm.slane %v42, 0
    %v1465 = vsel %vm1213, %v1423, 0
    %v1468 = vsel %vm1213, %v1424, 0
    %v1471 = vsel %vm1213, %v1425, 0
    %v1474 = vsel %vm1213, %v1426, 0
    %v1477 = vsel %vm1213, %v1427, 0
    %v1480 = vsel %vm1213, %v1428, 0
    %v1483 = vsel %vm1213, %v1429, 0
    %v1486 = vsel %vm1213, %v1430, 0
    %v1489 = vsel %vm1213, %v1431, 0
    %v1492 = vsel %vm1213, %v1432, 0
    %v1495 = vsel %vm1213, %v1433, 0
    %v1498 = vsel %vm1213, %v1434, 0
    %v1501 = vsel %vm1213, %v1435, 0
    %v1504 = vsel %vm1213, %v1436, 0
    %v1507 = vsel %vm1213, %v1437, 0
    %v1510 = vsel %vm1213, %v1438, 0
    %v1513 = vsel %vm1213, %v1439, 0
    %v1516 = vsel %vm1213, %v1440, 0
    %v1519 = vsel %vm1213, %v1441, 0
    %v1522 = vsel %vm1213, %v1442, 0
    %v1525 = vsel %vm1213, %v1443, 0
    %v1528 = vsel %vm1213, %v1444, 0
    %v1531 = vsel %vm1213, %v1445, 0
    %v1534 = vsel %vm1213, %v1446, 0
    %v1537 = vsel %vm1213, %v1447, 0
    %v1540 = vsel %vm1213, %v1448, 0
    %v1543 = vsel %vm1213, %v1449, 0
    %v1546 = vsel %vm1213, %v1450, 0
    %v1549 = vsel %vm1213, %v1451, 0
    %v1552 = vsel %vm1213, %v1452, 0
    %v1555 = vsel %vm1213, %v1453, 0
    %v1558 = vsel %vm1213, %v1454, 0
    %1560 = vmatpush.msra.mxu0 0.0
    %1561 = vmatpush.msra.mxu0 0.0
    %1562 = vmatpush.msra.mxu0 0.0
    %1563 = vmatpush.msra.mxu0 0.0
    %1564 = vmatpush.msra.mxu0 0.0
    %1565 = vmatpush.msra.mxu0 0.0
    %1566 = vmatpush.msra.mxu0 0.0
    %1567 = vmatpush.msra.mxu0 0.0
    %1568 = vmatpush.msra.mxu0 %v1462
    %1569 = vmatpush.msra.mxu0 %v1461
    %1570 = vmatpush.msra.mxu0 %v1460
    %1571 = vmatpush.msra.mxu0 %v1459
    %1572 = vmatpush.msra.mxu0 %v1458
    %1573 = vmatpush.msra.mxu0 %v1457
    %1574 = vmatpush.msra.mxu0 %v1456
    %1575 = vmatpush.msra.mxu0 %v1455
    %1576 = vmatmul.f32.gmra.mxu0 %v1465
    %v1577 = vpop.f32.mrf.mxu0
    %v1578 = vadd.f32 %v1463, %v1577
    %1579 = vmatmul.f32.gmra.mxu0 %v1468
    %v1580 = vpop.f32.mrf.mxu0
    %v1581 = vadd.f32 %v1463, %v1580
    %1582 = vmatmul.f32.gmra.mxu0 %v1471
    %v1583 = vpop.f32.mrf.mxu0
    %v1584 = vadd.f32 %v1463, %v1583
    %1585 = vmatmul.f32.gmra.mxu0 %v1474
    %v1586 = vpop.f32.mrf.mxu0
    %v1587 = vadd.f32 %v1463, %v1586
    %1588 = vmatmul.f32.gmra.mxu0 %v1477
    %v1589 = vpop.f32.mrf.mxu0
    %v1590 = vadd.f32 %v1463, %v1589
    %1591 = vmatmul.f32.gmra.mxu0 %v1480
    %v1592 = vpop.f32.mrf.mxu0
    %v1593 = vadd.f32 %v1463, %v1592
    %1594 = vmatmul.f32.gmra.mxu0 %v1483
    %v1595 = vpop.f32.mrf.mxu0
    %v1596 = vadd.f32 %v1463, %v1595
    %1597 = vmatmul.f32.gmra.mxu0 %v1486
    %v1598 = vpop.f32.mrf.mxu0
    %v1599 = vadd.f32 %v1463, %v1598
    %1600 = vmatmul.f32.gmra.mxu0 %v1489
    %v1601 = vpop.f32.mrf.mxu0
    %v1602 = vadd.f32 %v1463, %v1601
    %1603 = vmatmul.f32.gmra.mxu0 %v1492
    %v1604 = vpop.f32.mrf.mxu0
    %v1605 = vadd.f32 %v1463, %v1604
    %1606 = vmatmul.f32.gmra.mxu0 %v1495
    %v1607 = vpop.f32.mrf.mxu0
    %v1608 = vadd.f32 %v1463, %v1607
    %1609 = vmatmul.f32.gmra.mxu0 %v1498
    %v1610 = vpop.f32.mrf.mxu0
    %v1611 = vadd.f32 %v1463, %v1610
    %1612 = vmatmul.f32.gmra.mxu0 %v1501
    %v1613 = vpop.f32.mrf.mxu0
    %v1614 = vadd.f32 %v1463, %v1613
    %1615 = vmatmul.f32.gmra.mxu0 %v1504
    %v1616 = vpop.f32.mrf.mxu0
    %v1617 = vadd.f32 %v1463, %v1616
    %1618 = vmatmul.f32.gmra.mxu0 %v1507
    %v1619 = vpop.f32.mrf.mxu0
    %v1620 = vadd.f32 %v1463, %v1619
    %1621 = vmatmul.f32.gmra.mxu0 %v1510
    %v1622 = vpop.f32.mrf.mxu0
    %v1623 = vadd.f32 %v1463, %v1622
    %1624 = vmatmul.f32.gmra.mxu0 %v1513
    %v1625 = vpop.f32.mrf.mxu0
    %v1626 = vadd.f32 %v1463, %v1625
    %1627 = vmatmul.f32.gmra.mxu0 %v1516
    %v1628 = vpop.f32.mrf.mxu0
    %v1629 = vadd.f32 %v1463, %v1628
    %1630 = vmatmul.f32.gmra.mxu0 %v1519
    %v1631 = vpop.f32.mrf.mxu0
    %v1632 = vadd.f32 %v1463, %v1631
    %1633 = vmatmul.f32.gmra.mxu0 %v1522
    %v1634 = vpop.f32.mrf.mxu0
    %v1635 = vadd.f32 %v1463, %v1634
    %1636 = vmatmul.f32.gmra.mxu0 %v1525
    %v1637 = vpop.f32.mrf.mxu0
    %v1638 = vadd.f32 %v1463, %v1637
    %1639 = vmatmul.f32.gmra.mxu0 %v1528
    %v1640 = vpop.f32.mrf.mxu0
    %v1641 = vadd.f32 %v1463, %v1640
    %1642 = vmatmul.f32.gmra.mxu0 %v1531
    %v1643 = vpop.f32.mrf.mxu0
    %v1644 = vadd.f32 %v1463, %v1643
    %1645 = vmatmul.f32.gmra.mxu0 %v1534
    %v1646 = vpop.f32.mrf.mxu0
    %v1647 = vadd.f32 %v1463, %v1646
    %1648 = vmatmul.f32.gmra.mxu0 %v1537
    %v1649 = vpop.f32.mrf.mxu0
    %v1650 = vadd.f32 %v1463, %v1649
    %1651 = vmatmul.f32.gmra.mxu0 %v1540
    %v1652 = vpop.f32.mrf.mxu0
    %v1653 = vadd.f32 %v1463, %v1652
    %1654 = vmatmul.f32.gmra.mxu0 %v1543
    %v1655 = vpop.f32.mrf.mxu0
    %v1656 = vadd.f32 %v1463, %v1655
    %1657 = vmatmul.f32.gmra.mxu0 %v1546
    %v1658 = vpop.f32.mrf.mxu0
    %v1659 = vadd.f32 %v1463, %v1658
    %1660 = vmatmul.f32.gmra.mxu0 %v1549
    %v1661 = vpop.f32.mrf.mxu0
    %v1662 = vadd.f32 %v1463, %v1661
    %1663 = vmatmul.f32.gmra.mxu0 %v1552
    %v1664 = vpop.f32.mrf.mxu0
    %v1665 = vadd.f32 %v1463, %v1664
    %1666 = vmatmul.f32.gmra.mxu0 %v1555
    %v1667 = vpop.f32.mrf.mxu0
    %v1668 = vadd.f32 %v1463, %v1667
    %1669 = vmatmul.f32.gmra.mxu0 %v1558
    %v1670 = vpop.f32.mrf.mxu0
    %v1671 = vadd.f32 %v1463, %v1670
    %1672 = vdwg.mxu0
    %v1673 = vmax.f32 %v1578, 0.0
    %v1674 = vmax.f32 %v1581, 0.0
    %v1675 = vmax.f32 %v1584, 0.0
    %v1676 = vmax.f32 %v1587, 0.0
    %v1677 = vmax.f32 %v1590, 0.0
    %v1678 = vmax.f32 %v1593, 0.0
    %v1679 = vmax.f32 %v1596, 0.0
    %v1680 = vmax.f32 %v1599, 0.0
    %v1681 = vmax.f32 %v1602, 0.0
    %v1682 = vmax.f32 %v1605, 0.0
    %v1683 = vmax.f32 %v1608, 0.0
    %v1684 = vmax.f32 %v1611, 0.0
    %v1685 = vmax.f32 %v1614, 0.0
    %v1686 = vmax.f32 %v1617, 0.0
    %v1687 = vmax.f32 %v1620, 0.0
    %v1688 = vmax.f32 %v1623, 0.0
    %v1689 = vmax.f32 %v1626, 0.0
    %v1690 = vmax.f32 %v1629, 0.0
    %v1691 = vmax.f32 %v1632, 0.0
    %v1692 = vmax.f32 %v1635, 0.0
    %v1693 = vmax.f32 %v1638, 0.0
    %v1694 = vmax.f32 %v1641, 0.0
    %v1695 = vmax.f32 %v1644, 0.0
    %v1696 = vmax.f32 %v1647, 0.0
    %v1697 = vmax.f32 %v1650, 0.0
    %v1698 = vmax.f32 %v1653, 0.0
    %v1699 = vmax.f32 %v1656, 0.0
    %v1700 = vmax.f32 %v1659, 0.0
    %v1701 = vmax.f32 %v1662, 0.0
    %v1702 = vmax.f32 %v1665, 0.0
    %v1703 = vmax.f32 %v1668, 0.0
    %v1704 = vmax.f32 %v1671, 0.0
    %v1705 = vld [vmem:[%s4] sm:$0xff]
    %v1706 = vld [vmem:[%s4 + $0x8] sm:$0xff]
    %v1707 = vld [vmem:[%s4 + $0x10] sm:$0xff]
    %v1708 = vld [vmem:[%s4 + $0x18] sm:$0xff]
    %v1709 = vld [vmem:[%s4 + $0x20] sm:$0xff]
    %v1710 = vld [vmem:[%s4 + $0x28] sm:$0xff]
    %v1711 = vld [vmem:[%s4 + $0x30] sm:$0xff]
    %v1712 = vld [vmem:[%s4 + $0x38] sm:$0xff]
    %v1713 = vperm.slane %v43, 0
    %v1715 = vsel %vm1213, %v1673, 0
    %v1718 = vsel %vm1213, %v1674, 0
    %v1721 = vsel %vm1213, %v1675, 0
    %v1724 = vsel %vm1213, %v1676, 0
    %v1727 = vsel %vm1213, %v1677, 0
    %v1730 = vsel %vm1213, %v1678, 0
    %v1733 = vsel %vm1213, %v1679, 0
    %v1736 = vsel %vm1213, %v1680, 0
    %v1739 = vsel %vm1213, %v1681, 0
    %v1742 = vsel %vm1213, %v1682, 0
    %v1745 = vsel %vm1213, %v1683, 0
    %v1748 = vsel %vm1213, %v1684, 0
    %v1751 = vsel %vm1213, %v1685, 0
    %v1754 = vsel %vm1213, %v1686, 0
    %v1757 = vsel %vm1213, %v1687, 0
    %v1760 = vsel %vm1213, %v1688, 0
    %v1763 = vsel %vm1213, %v1689, 0
    %v1766 = vsel %vm1213, %v1690, 0
    %v1769 = vsel %vm1213, %v1691, 0
    %v1772 = vsel %vm1213, %v1692, 0
    %v1775 = vsel %vm1213, %v1693, 0
    %v1778 = vsel %vm1213, %v1694, 0
    %v1781 = vsel %vm1213, %v1695, 0
    %v1784 = vsel %vm1213, %v1696, 0
    %v1787 = vsel %vm1213, %v1697, 0
    %v1790 = vsel %vm1213, %v1698, 0
    %v1793 = vsel %vm1213, %v1699, 0
    %v1796 = vsel %vm1213, %v1700, 0
    %v1799 = vsel %vm1213, %v1701, 0
    %v1802 = vsel %vm1213, %v1702, 0
    %v1805 = vsel %vm1213, %v1703, 0
    %v1808 = vsel %vm1213, %v1704, 0
    %1810 = vmatpush.msra.mxu0 0.0
    %1811 = vmatpush.msra.mxu0 0.0
    %1812 = vmatpush.msra.mxu0 0.0
    %1813 = vmatpush.msra.mxu0 0.0
    %1814 = vmatpush.msra.mxu0 0.0
    %1815 = vmatpush.msra.mxu0 0.0
    %1816 = vmatpush.msra.mxu0 0.0
    %1817 = vmatpush.msra.mxu0 0.0
    %1818 = vmatpush.msra.mxu0 %v1712
    %1819 = vmatpush.msra.mxu0 %v1711
    %1820 = vmatpush.msra.mxu0 %v1710
    %1821 = vmatpush.msra.mxu0 %v1709
    %1822 = vmatpush.msra.mxu0 %v1708
    %1823 = vmatpush.msra.mxu0 %v1707
    %1824 = vmatpush.msra.mxu0 %v1706
    %1825 = vmatpush.msra.mxu0 %v1705
    %1826 = vmatmul.f32.gmra.mxu0 %v1715
    %v1827 = vpop.f32.mrf.mxu0
    %v1828 = vadd.f32 %v1713, %v1827
    %1829 = vmatmul.f32.gmra.mxu0 %v1718
    %v1830 = vpop.f32.mrf.mxu0
    %v1831 = vadd.f32 %v1713, %v1830
    %1832 = vmatmul.f32.gmra.mxu0 %v1721
    %v1833 = vpop.f32.mrf.mxu0
    %v1834 = vadd.f32 %v1713, %v1833
    %1835 = vmatmul.f32.gmra.mxu0 %v1724
    %v1836 = vpop.f32.mrf.mxu0
    %v1837 = vadd.f32 %v1713, %v1836
    %1838 = vmatmul.f32.gmra.mxu0 %v1727
    %v1839 = vpop.f32.mrf.mxu0
    %v1840 = vadd.f32 %v1713, %v1839
    %1841 = vmatmul.f32.gmra.mxu0 %v1730
    %v1842 = vpop.f32.mrf.mxu0
    %v1843 = vadd.f32 %v1713, %v1842
    %1844 = vmatmul.f32.gmra.mxu0 %v1733
    %v1845 = vpop.f32.mrf.mxu0
    %v1846 = vadd.f32 %v1713, %v1845
    %1847 = vmatmul.f32.gmra.mxu0 %v1736
    %v1848 = vpop.f32.mrf.mxu0
    %v1849 = vadd.f32 %v1713, %v1848
    %1850 = vmatmul.f32.gmra.mxu0 %v1739
    %v1851 = vpop.f32.mrf.mxu0
    %v1852 = vadd.f32 %v1713, %v1851
    %1853 = vmatmul.f32.gmra.mxu0 %v1742
    %v1854 = vpop.f32.mrf.mxu0
    %v1855 = vadd.f32 %v1713, %v1854
    %1856 = vmatmul.f32.gmra.mxu0 %v1745
    %v1857 = vpop.f32.mrf.mxu0
    %v1858 = vadd.f32 %v1713, %v1857
    %1859 = vmatmul.f32.gmra.mxu0 %v1748
    %v1860 = vpop.f32.mrf.mxu0
    %v1861 = vadd.f32 %v1713, %v1860
    %1862 = vmatmul.f32.gmra.mxu0 %v1751
    %v1863 = vpop.f32.mrf.mxu0
    %v1864 = vadd.f32 %v1713, %v1863
    %1865 = vmatmul.f32.gmra.mxu0 %v1754
    %v1866 = vpop.f32.mrf.mxu0
    %v1867 = vadd.f32 %v1713, %v1866
    %1868 = vmatmul.f32.gmra.mxu0 %v1757
    %v1869 = vpop.f32.mrf.mxu0
    %v1870 = vadd.f32 %v1713, %v1869
    %1871 = vmatmul.f32.gmra.mxu0 %v1760
    %v1872 = vpop.f32.mrf.mxu0
    %v1873 = vadd.f32 %v1713, %v1872
    %1874 = vmatmul.f32.gmra.mxu0 %v1763
    %v1875 = vpop.f32.mrf.mxu0
    %v1876 = vadd.f32 %v1713, %v1875
    %1877 = vmatmul.f32.gmra.mxu0 %v1766
    %v1878 = vpop.f32.mrf.mxu0
    %v1879 = vadd.f32 %v1713, %v1878
    %1880 = vmatmul.f32.gmra.mxu0 %v1769
    %v1881 = vpop.f32.mrf.mxu0
    %v1882 = vadd.f32 %v1713, %v1881
    %1883 = vmatmul.f32.gmra.mxu0 %v1772
    %v1884 = vpop.f32.mrf.mxu0
    %v1885 = vadd.f32 %v1713, %v1884
    %1886 = vmatmul.f32.gmra.mxu0 %v1775
    %v1887 = vpop.f32.mrf.mxu0
    %v1888 = vadd.f32 %v1713, %v1887
    %1889 = vmatmul.f32.gmra.mxu0 %v1778
    %v1890 = vpop.f32.mrf.mxu0
    %v1891 = vadd.f32 %v1713, %v1890
    %1892 = vmatmul.f32.gmra.mxu0 %v1781
    %v1893 = vpop.f32.mrf.mxu0
    %v1894 = vadd.f32 %v1713, %v1893
    %1895 = vmatmul.f32.gmra.mxu0 %v1784
    %v1896 = vpop.f32.mrf.mxu0
    %v1897 = vadd.f32 %v1713, %v1896
    %1898 = vmatmul.f32.gmra.mxu0 %v1787
    %v1899 = vpop.f32.mrf.mxu0
    %v1900 = vadd.f32 %v1713, %v1899
    %1901 = vmatmul.f32.gmra.mxu0 %v1790
    %v1902 = vpop.f32.mrf.mxu0
    %v1903 = vadd.f32 %v1713, %v1902
    %1904 = vmatmul.f32.gmra.mxu0 %v1793
    %v1905 = vpop.f32.mrf.mxu0
    %v1906 = vadd.f32 %v1713, %v1905
    %1907 = vmatmul.f32.gmra.mxu0 %v1796
    %v1908 = vpop.f32.mrf.mxu0
    %v1909 = vadd.f32 %v1713, %v1908
    %1910 = vmatmul.f32.gmra.mxu0 %v1799
    %v1911 = vpop.f32.mrf.mxu0
    %v1912 = vadd.f32 %v1713, %v1911
    %1913 = vmatmul.f32.gmra.mxu0 %v1802
    %v1914 = vpop.f32.mrf.mxu0
    %v1915 = vadd.f32 %v1713, %v1914
    %1916 = vmatmul.f32.gmra.mxu0 %v1805
    %v1917 = vpop.f32.mrf.mxu0
    %v1918 = vadd.f32 %v1713, %v1917
    %1919 = vmatmul.f32.gmra.mxu0 %v1808
    %v1920 = vpop.f32.mrf.mxu0
    %v1921 = vadd.f32 %v1713, %v1920
    %1922 = vdwg.mxu0
    %1923 = vmax.xlane.f32.xlu0 %v1828
    %v1924 = vpop.xlane.xlu0 %1923
    %1925 = vmax.xlane.f32.xlu0 %v1831
    %v1926 = vpop.xlane.xlu0 %1925
    %1927 = vmax.xlane.f32.xlu0 %v1834
    %v1928 = vpop.xlane.xlu0 %1927
    %1929 = vmax.xlane.f32.xlu0 %v1837
    %v1930 = vpop.xlane.xlu0 %1929
    %1931 = vmax.xlane.f32.xlu0 %v1840
    %v1932 = vpop.xlane.xlu0 %1931
    %1933 = vmax.xlane.f32.xlu0 %v1843
    %v1934 = vpop.xlane.xlu0 %1933
    %1935 = vmax.xlane.f32.xlu0 %v1846
    %v1936 = vpop.xlane.xlu0 %1935
    %1937 = vmax.xlane.f32.xlu0 %v1849
    %v1938 = vpop.xlane.xlu0 %1937
    %1939 = vmax.xlane.f32.xlu0 %v1852
    %v1940 = vpop.xlane.xlu0 %1939
    %1941 = vmax.xlane.f32.xlu0 %v1855
    %v1942 = vpop.xlane.xlu0 %1941
    %1943 = vmax.xlane.f32.xlu0 %v1858
    %v1944 = vpop.xlane.xlu0 %1943
    %1945 = vmax.xlane.f32.xlu0 %v1861
    %v1946 = vpop.xlane.xlu0 %1945
    %1947 = vmax.xlane.f32.xlu0 %v1864
    %v1948 = vpop.xlane.xlu0 %1947
    %1949 = vmax.xlane.f32.xlu0 %v1867
    %v1950 = vpop.xlane.xlu0 %1949
    %1951 = vmax.xlane.f32.xlu0 %v1870
    %v1952 = vpop.xlane.xlu0 %1951
    %1953 = vmax.xlane.f32.xlu0 %v1873
    %v1954 = vpop.xlane.xlu0 %1953
    %1955 = vmax.xlane.f32.xlu0 %v1876
    %v1956 = vpop.xlane.xlu0 %1955
    %1957 = vmax.xlane.f32.xlu0 %v1879
    %v1958 = vpop.xlane.xlu0 %1957
    %1959 = vmax.xlane.f32.xlu0 %v1882
    %v1960 = vpop.xlane.xlu0 %1959
    %1961 = vmax.xlane.f32.xlu0 %v1885
    %v1962 = vpop.xlane.xlu0 %1961
    %1963 = vmax.xlane.f32.xlu0 %v1888
    %v1964 = vpop.xlane.xlu0 %1963
    %1965 = vmax.xlane.f32.xlu0 %v1891
    %v1966 = vpop.xlane.xlu0 %1965
    %1967 = vmax.xlane.f32.xlu0 %v1894
    %v1968 = vpop.xlane.xlu0 %1967
    %1969 = vmax.xlane.f32.xlu0 %v1897
    %v1970 = vpop.xlane.xlu0 %1969
    %1971 = vmax.xlane.f32.xlu0 %v1900
    %v1972 = vpop.xlane.xlu0 %1971
    %1973 = vmax.xlane.f32.xlu0 %v1903
    %v1974 = vpop.xlane.xlu0 %1973
    %1975 = vmax.xlane.f32.xlu0 %v1906
    %v1976 = vpop.xlane.xlu0 %1975
    %1977 = vmax.xlane.f32.xlu0 %v1909
    %v1978 = vpop.xlane.xlu0 %1977
    %1979 = vmax.xlane.f32.xlu0 %v1912
    %v1980 = vpop.xlane.xlu0 %1979
    %1981 = vmax.xlane.f32.xlu0 %v1915
    %v1982 = vpop.xlane.xlu0 %1981
    %1983 = vmax.xlane.f32.xlu0 %v1918
    %v1984 = vpop.xlane.xlu0 %1983
    %1985 = vmax.xlane.f32.xlu0 %v1921
    %v1986 = vpop.xlane.xlu0 %1985
    %v1987 = vsub.f32 %v1828, %v1924
    %v1988 = vsub.f32 %v1831, %v1926
    %v1989 = vsub.f32 %v1834, %v1928
    %v1990 = vsub.f32 %v1837, %v1930
    %v1991 = vsub.f32 %v1840, %v1932
    %v1992 = vsub.f32 %v1843, %v1934
    %v1993 = vsub.f32 %v1846, %v1936
    %v1994 = vsub.f32 %v1849, %v1938
    %v1995 = vsub.f32 %v1852, %v1940
    %v1996 = vsub.f32 %v1855, %v1942
    %v1997 = vsub.f32 %v1858, %v1944
    %v1998 = vsub.f32 %v1861, %v1946
    %v1999 = vsub.f32 %v1864, %v1948
    %v2000 = vsub.f32 %v1867, %v1950
    %v2001 = vsub.f32 %v1870, %v1952
    %v2002 = vsub.f32 %v1873, %v1954
    %v2003 = vsub.f32 %v1876, %v1956
    %v2004 = vsub.f32 %v1879, %v1958
    %v2005 = vsub.f32 %v1882, %v1960
    %v2006 = vsub.f32 %v1885, %v1962
    %v2007 = vsub.f32 %v1888, %v1964
    %v2008 = vsub.f32 %v1891, %v1966
    %v2009 = vsub.f32 %v1894, %v1968
    %v2010 = vsub.f32 %v1897, %v1970
    %v2011 = vsub.f32 %v1900, %v1972
    %v2012 = vsub.f32 %v1903, %v1974
    %v2013 = vsub.f32 %v1906, %v1976
    %v2014 = vsub.f32 %v1909, %v1978
    %v2015 = vsub.f32 %v1912, %v1980
    %v2016 = vsub.f32 %v1915, %v1982
    %v2017 = vsub.f32 %v1918, %v1984
    %v2018 = vsub.f32 %v1921, %v1986
    %v2019 = vmul.f32 %v1987, 1.442695
    %v2020 = vpow.pop %v2019
    %v2021 = vmul.f32 %v1988, 1.442695
    %v2022 = vpow.pop %v2021
    %v2023 = vmul.f32 %v1989, 1.442695
    %v2024 = vpow.pop %v2023
    %v2025 = vmul.f32 %v1990, 1.442695
    %v2026 = vpow.pop %v2025
    %v2027 = vmul.f32 %v1991, 1.442695
    %v2028 = vpow.pop %v2027
    %v2029 = vmul.f32 %v1992, 1.442695
    %v2030 = vpow.pop %v2029
    %v2031 = vmul.f32 %v1993, 1.442695
    %v2032 = vpow.pop %v2031
    %v2033 = vmul.f32 %v1994, 1.442695
    %v2034 = vpow.pop %v2033
    %v2035 = vmul.f32 %v1995, 1.442695
    %v2036 = vpow.pop %v2035
    %v2037 = vmul.f32 %v1996, 1.442695
    %v2038 = vpow.pop %v2037
    %v2039 = vmul.f32 %v1997, 1.442695
    %v2040 = vpow.pop %v2039
    %v2041 = vmul.f32 %v1998, 1.442695
    %v2042 = vpow.pop %v2041
    %v2043 = vmul.f32 %v1999, 1.442695
    %v2044 = vpow.pop %v2043
    %v2045 = vmul.f32 %v2000, 1.442695
    %v2046 = vpow.pop %v2045
    %v2047 = vmul.f32 %v2001, 1.442695
    %v2048 = vpow.pop %v2047
    %v2049 = vmul.f32 %v2002, 1.442695
    %v2050 = vpow.pop %v2049
    %v2051 = vmul.f32 %v2003, 1.442695
    %v2052 = vpow.pop %v2051
    %v2053 = vmul.f32 %v2004, 1.442695
    %v2054 = vpow.pop %v2053
    %v2055 = vmul.f32 %v2005, 1.442695
    %v2056 = vpow.pop %v2055
    %v2057 = vmul.f32 %v2006, 1.442695
    %v2058 = vpow.pop %v2057
    %v2059 = vmul.f32 %v2007, 1.442695
    %v2060 = vpow.pop %v2059
    %v2061 = vmul.f32 %v2008, 1.442695
    %v2062 = vpow.pop %v2061
    %v2063 = vmul.f32 %v2009, 1.442695
    %v2064 = vpow.pop %v2063
    %v2065 = vmul.f32 %v2010, 1.442695
    %v2066 = vpow.pop %v2065
    %v2067 = vmul.f32 %v2011, 1.442695
    %v2068 = vpow.pop %v2067
    %v2069 = vmul.f32 %v2012, 1.442695
    %v2070 = vpow.pop %v2069
    %v2071 = vmul.f32 %v2013, 1.442695
    %v2072 = vpow.pop %v2071
    %v2073 = vmul.f32 %v2014, 1.442695
    %v2074 = vpow.pop %v2073
    %v2075 = vmul.f32 %v2015, 1.442695
    %v2076 = vpow.pop %v2075
    %v2077 = vmul.f32 %v2016, 1.442695
    %v2078 = vpow.pop %v2077
    %v2079 = vmul.f32 %v2017, 1.442695
    %v2080 = vpow.pop %v2079
    %v2081 = vmul.f32 %v2018, 1.442695
    %v2082 = vpow.pop %v2081
    %2083 = vadd.xlane.f32.xlu0 %v2020
    %v2084 = vpop.xlane.xlu0 %2083
    %2085 = vadd.xlane.f32.xlu0 %v2022
    %v2086 = vpop.xlane.xlu0 %2085
    %2087 = vadd.xlane.f32.xlu0 %v2024
    %v2088 = vpop.xlane.xlu0 %2087
    %2089 = vadd.xlane.f32.xlu0 %v2026
    %v2090 = vpop.xlane.xlu0 %2089
    %2091 = vadd.xlane.f32.xlu0 %v2028
    %v2092 = vpop.xlane.xlu0 %2091
    %2093 = vadd.xlane.f32.xlu0 %v2030
    %v2094 = vpop.xlane.xlu0 %2093
    %2095 = vadd.xlane.f32.xlu0 %v2032
    %v2096 = vpop.xlane.xlu0 %2095
    %2097 = vadd.xlane.f32.xlu0 %v2034
    %v2098 = vpop.xlane.xlu0 %2097
    %2099 = vadd.xlane.f32.xlu0 %v2036
    %v2100 = vpop.xlane.xlu0 %2099
    %2101 = vadd.xlane.f32.xlu0 %v2038
    %v2102 = vpop.xlane.xlu0 %2101
    %2103 = vadd.xlane.f32.xlu0 %v2040
    %v2104 = vpop.xlane.xlu0 %2103
    %2105 = vadd.xlane.f32.xlu0 %v2042
    %v2106 = vpop.xlane.xlu0 %2105
    %2107 = vadd.xlane.f32.xlu0 %v2044
    %v2108 = vpop.xlane.xlu0 %2107
    %2109 = vadd.xlane.f32.xlu0 %v2046
    %v2110 = vpop.xlane.xlu0 %2109
    %2111 = vadd.xlane.f32.xlu0 %v2048
    %v2112 = vpop.xlane.xlu0 %2111
    %2113 = vadd.xlane.f32.xlu0 %v2050
    %v2114 = vpop.xlane.xlu0 %2113
    %2115 = vadd.xlane.f32.xlu0 %v2052
    %v2116 = vpop.xlane.xlu0 %2115
    %2117 = vadd.xlane.f32.xlu0 %v2054
    %v2118 = vpop.xlane.xlu0 %2117
    %2119 = vadd.xlane.f32.xlu0 %v2056
    %v2120 = vpop.xlane.xlu0 %2119
    %2121 = vadd.xlane.f32.xlu0 %v2058
    %v2122 = vpop.xlane.xlu0 %2121
    %2123 = vadd.xlane.f32.xlu0 %v2060
    %v2124 = vpop.xlane.xlu0 %2123
    %2125 = vadd.xlane.f32.xlu0 %v2062
    %v2126 = vpop.xlane.xlu0 %2125
    %2127 = vadd.xlane.f32.xlu0 %v2064
    %v2128 = vpop.xlane.xlu0 %2127
    %2129 = vadd.xlane.f32.xlu0 %v2066
    %v2130 = vpop.xlane.xlu0 %2129
    %2131 = vadd.xlane.f32.xlu0 %v2068
    %v2132 = vpop.xlane.xlu0 %2131
    %2133 = vadd.xlane.f32.xlu0 %v2070
    %v2134 = vpop.xlane.xlu0 %2133
    %2135 = vadd.xlane.f32.xlu0 %v2072
    %v2136 = vpop.xlane.xlu0 %2135
    %2137 = vadd.xlane.f32.xlu0 %v2074
    %v2138 = vpop.xlane.xlu0 %2137
    %2139 = vadd.xlane.f32.xlu0 %v2076
    %v2140 = vpop.xlane.xlu0 %2139
    %2141 = vadd.xlane.f32.xlu0 %v2078
    %v2142 = vpop.xlane.xlu0 %2141
    %2143 = vadd.xlane.f32.xlu0 %v2080
    %v2144 = vpop.xlane.xlu0 %2143
    %2145 = vadd.xlane.f32.xlu0 %v2082
    %v2146 = vpop.xlane.xlu0 %2145
    %v2147 = vlog2.pop %v2084
    %v2148 = vmul.f32 %v2147, 0.6931472
    %v2149 = vlog2.pop %v2086
    %v2150 = vmul.f32 %v2149, 0.6931472
    %v2151 = vlog2.pop %v2088
    %v2152 = vmul.f32 %v2151, 0.6931472
    %v2153 = vlog2.pop %v2090
    %v2154 = vmul.f32 %v2153, 0.6931472
    %v2155 = vlog2.pop %v2092
    %v2156 = vmul.f32 %v2155, 0.6931472
    %v2157 = vlog2.pop %v2094
    %v2158 = vmul.f32 %v2157, 0.6931472
    %v2159 = vlog2.pop %v2096
    %v2160 = vmul.f32 %v2159, 0.6931472
    %v2161 = vlog2.pop %v2098
    %v2162 = vmul.f32 %v2161, 0.6931472
    %v2163 = vlog2.pop %v2100
    %v2164 = vmul.f32 %v2163, 0.6931472
    %v2165 = vlog2.pop %v2102
    %v2166 = vmul.f32 %v2165, 0.6931472
    %v2167 = vlog2.pop %v2104
    %v2168 = vmul.f32 %v2167, 0.6931472
    %v2169 = vlog2.pop %v2106
    %v2170 = vmul.f32 %v2169, 0.6931472
    %v2171 = vlog2.pop %v2108
    %v2172 = vmul.f32 %v2171, 0.6931472
    %v2173 = vlog2.pop %v2110
    %v2174 = vmul.f32 %v2173, 0.6931472
    %v2175 = vlog2.pop %v2112
    %v2176 = vmul.f32 %v2175, 0.6931472
    %v2177 = vlog2.pop %v2114
    %v2178 = vmul.f32 %v2177, 0.6931472
    %v2179 = vlog2.pop %v2116
    %v2180 = vmul.f32 %v2179, 0.6931472
    %v2181 = vlog2.pop %v2118
    %v2182 = vmul.f32 %v2181, 0.6931472
    %v2183 = vlog2.pop %v2120
    %v2184 = vmul.f32 %v2183, 0.6931472
    %v2185 = vlog2.pop %v2122
    %v2186 = vmul.f32 %v2185, 0.6931472
    %v2187 = vlog2.pop %v2124
    %v2188 = vmul.f32 %v2187, 0.6931472
    %v2189 = vlog2.pop %v2126
    %v2190 = vmul.f32 %v2189, 0.6931472
    %v2191 = vlog2.pop %v2128
    %v2192 = vmul.f32 %v2191, 0.6931472
    %v2193 = vlog2.pop %v2130
    %v2194 = vmul.f32 %v2193, 0.6931472
    %v2195 = vlog2.pop %v2132
    %v2196 = vmul.f32 %v2195, 0.6931472
    %v2197 = vlog2.pop %v2134
    %v2198 = vmul.f32 %v2197, 0.6931472
    %v2199 = vlog2.pop %v2136
    %v2200 = vmul.f32 %v2199, 0.6931472
    %v2201 = vlog2.pop %v2138
    %v2202 = vmul.f32 %v2201, 0.6931472
    %v2203 = vlog2.pop %v2140
    %v2204 = vmul.f32 %v2203, 0.6931472
    %v2205 = vlog2.pop %v2142
    %v2206 = vmul.f32 %v2205, 0.6931472
    %v2207 = vlog2.pop %v2144
    %v2208 = vmul.f32 %v2207, 0.6931472
    %v2209 = vlog2.pop %v2146
    %v2210 = vmul.f32 %v2209, 0.6931472
    %v2211 = vsub.f32 %v1987, %v2148
    %v2212 = vsub.f32 %v1988, %v2150
    %v2213 = vsub.f32 %v1989, %v2152
    %v2214 = vsub.f32 %v1990, %v2154
    %v2215 = vsub.f32 %v1991, %v2156
    %v2216 = vsub.f32 %v1992, %v2158
    %v2217 = vsub.f32 %v1993, %v2160
    %v2218 = vsub.f32 %v1994, %v2162
    %v2219 = vsub.f32 %v1995, %v2164
    %v2220 = vsub.f32 %v1996, %v2166
    %v2221 = vsub.f32 %v1997, %v2168
    %v2222 = vsub.f32 %v1998, %v2170
    %v2223 = vsub.f32 %v1999, %v2172
    %v2224 = vsub.f32 %v2000, %v2174
    %v2225 = vsub.f32 %v2001, %v2176
    %v2226 = vsub.f32 %v2002, %v2178
    %v2227 = vsub.f32 %v2003, %v2180
    %v2228 = vsub.f32 %v2004, %v2182
    %v2229 = vsub.f32 %v2005, %v2184
    %v2230 = vsub.f32 %v2006, %v2186
    %v2231 = vsub.f32 %v2007, %v2188
    %v2232 = vsub.f32 %v2008, %v2190
    %v2233 = vsub.f32 %v2009, %v2192
    %v2234 = vsub.f32 %v2010, %v2194
    %v2235 = vsub.f32 %v2011, %v2196
    %v2236 = vsub.f32 %v2012, %v2198
    %v2237 = vsub.f32 %v2013, %v2200
    %v2238 = vsub.f32 %v2014, %v2202
    %v2239 = vsub.f32 %v2015, %v2204
    %v2240 = vsub.f32 %v2016, %v2206
    %v2241 = vsub.f32 %v2017, %v2208
    %v2242 = vsub.f32 %v2018, %v2210
    %2243 = vst [vmem:[#allocation5] sm:$0xff] %v2211
    %2244 = vst [vmem:[#allocation5 + $0x8] sm:$0xff] %v2212
    %2245 = vst [vmem:[#allocation5 + $0x10] sm:$0xff] %v2213
    %2246 = vst [vmem:[#allocation5 + $0x18] sm:$0xff] %v2214
    %2247 = vst [vmem:[#allocation5 + $0x20] sm:$0xff] %v2215
    %2248 = vst [vmem:[#allocation5 + $0x28] sm:$0xff] %v2216
    %2249 = vst [vmem:[#allocation5 + $0x30] sm:$0xff] %v2217
    %2250 = vst [vmem:[#allocation5 + $0x38] sm:$0xff] %v2218
    %2251 = vst [vmem:[#allocation5 + $0x40] sm:$0xff] %v2219
    %2252 = vst [vmem:[#allocation5 + $0x48] sm:$0xff] %v2220
    %2253 = vst [vmem:[#allocation5 + $0x50] sm:$0xff] %v2221
    %2254 = vst [vmem:[#allocation5 + $0x58] sm:$0xff] %v2222
    %2255 = vst [vmem:[#allocation5 + $0x60] sm:$0xff] %v2223
    %2256 = vst [vmem:[#allocation5 + $0x68] sm:$0xff] %v2224
    %2257 = vst [vmem:[#allocation5 + $0x70] sm:$0xff] %v2225
    %2258 = vst [vmem:[#allocation5 + $0x78] sm:$0xff] %v2226
    %2259 = vst [vmem:[#allocation5 + $0x80] sm:$0xff] %v2227
    %2260 = vst [vmem:[#allocation5 + $0x88] sm:$0xff] %v2228
    %2261 = vst [vmem:[#allocation5 + $0x90] sm:$0xff] %v2229
    %2262 = vst [vmem:[#allocation5 + $0x98] sm:$0xff] %v2230
    %2263 = vst [vmem:[#allocation5 + $0xa0] sm:$0xff] %v2231
    %2264 = vst [vmem:[#allocation5 + $0xa8] sm:$0xff] %v2232
    %2265 = vst [vmem:[#allocation5 + $0xb0] sm:$0xff] %v2233
    %2266 = vst [vmem:[#allocation5 + $0xb8] sm:$0xff] %v2234
    %2267 = vst [vmem:[#allocation5 + $0xc0] sm:$0xff] %v2235
    %2268 = vst [vmem:[#allocation5 + $0xc8] sm:$0xff] %v2236
    %2269 = vst [vmem:[#allocation5 + $0xd0] sm:$0xff] %v2237
    %2270 = vst [vmem:[#allocation5 + $0xd8] sm:$0xff] %v2238
    %2271 = vst [vmem:[#allocation5 + $0xe0] sm:$0xff] %v2239
    %2272 = vst [vmem:[#allocation5 + $0xe8] sm:$0xff] %v2240
    %2273 = vst [vmem:[#allocation5 + $0xf0] sm:$0xff] %v2241
    %2274 = vst [vmem:[#allocation5 + $0xf8] sm:$0xff] %v2242
    // Predicated region
    $region30: #{tpu_custom_call.1} parent=1 // pred_check
      _
    $region31: #{tpu_custom_call.1} parent=1 // pred_check_branch
      %2276 = sbr.rel (0) target = $region33
    $region32: #{tpu_custom_call.1} parent=1 // pred_region
      %2278 = vsyncadd [#allocation4], 0
      %s2279 = sshll.u32 [#allocation5], 4
      %s2280 = int_to_ptr.vmem [resolvable:$true] %s2279
      %s2281 = sshll.u32 %s6, 4
      %s2282 = int_to_ptr.hbm [resolvable:$true] %s2281
      %2287 = dma.vmem_to_hbm [thread:$0]  %s2280, 4096, %s2282, [#allocation4], 128, 128, 8
    $region33: #{tpu_custom_call.1} parent=1 // pred_fallthru
      _
    // Predicated region
    $region34: #{tpu_custom_call.1} parent=1 // pred_check
      _
    $region35: #{tpu_custom_call.1} parent=1 // pred_check_branch
      %2289 = sbr.rel (0) target = $region37
    $region36: #{tpu_custom_call.1} parent=1 // pred_region
      %2291 = dma.done [#allocation4], 4096
    $region37: #{tpu_custom_call.1} parent=1 // pred_fallthru
      _
    %2292 = vsyncpa [#allocation3], 1
    %2293 = vsyncpa [#allocation4], 1

</llo_original>
